<compile_context>
chip_gen: v5e
topology: v5e:2x2
jax: 0.10.0
libtpu: 0.0.40
codegen_flags: <defaults>
</compile_context>

<pallas_src>
import functools
import math

import jax
import jax.numpy as jnp
from jax.experimental import pallas as pl
from jax.experimental.pallas import tpu as pltpu


# --------------------------------------------------------------------------------------
# Kernel 1: multi-head self-attention (+ out-proj bias, residual, LayerNorm1)
# grid = (batch, head_groups); head_groups is a reduction axis with a VMEM accumulator.
# --------------------------------------------------------------------------------------
def _attn_ln1_kernel(compute_dtype, has_pos, g, hd, *refs):
    if has_pos:
        (src_ref, pos_ref, wq_ref, bq_ref, wk_ref, bk_ref, wv_ref, bv_ref,
         wo_ref, bo_ref, ln1w_ref, ln1b_ref, x_ref,
         acc_ref, qk_cd_ref, src_cd_ref) = refs
    else:
        (src_ref, wq_ref, bq_ref, wk_ref, bk_ref, wv_ref, bv_ref,
         wo_ref, bo_ref, ln1w_ref, ln1b_ref, x_ref,
         acc_ref, qk_cd_ref, src_cd_ref) = refs
        pos_ref = None

    f32 = jnp.float32
    cd = compute_dtype
    grp = pl.program_id(1)
    n_groups = pl.num_programs(1)
    eps = 1e-5

    @pl.when(grp == 0)
    def _init():
        acc_ref[...] = jnp.zeros_like(acc_ref)
        src_f32 = src_ref[...].astype(f32)
        src_cd_ref[...] = src_f32.astype(cd)
        if pos_ref is not None:
            qk_cd_ref[...] = (src_f32 + pos_ref[...].astype(f32)).astype(cd)
        else:
            qk_cd_ref[...] = src_f32.astype(cd)

    qk_cd = qk_cd_ref[...]                                   # (S, D) cached, bf16
    src_cd = src_cd_ref[...]

    # group-wide projections: N = g*hd (full MXU width at production shapes)
    q_g = jnp.dot(qk_cd, wq_ref[...], preferred_element_type=f32) + bq_ref[...]   # (S, g*hd)
    k_g = jnp.dot(qk_cd, wk_ref[...], preferred_element_type=f32) + bk_ref[...]
    v_g = jnp.dot(src_cd, wv_ref[...], preferred_element_type=f32) + bv_ref[...]

    heads = []
    for i in range(g):                                       # static, small unrolled loop
        sl = slice(i * hd, (i + 1) * hd)
        qh = q_g[:, sl].astype(cd)
        kh = k_g[:, sl].astype(cd)
        vh = v_g[:, sl].astype(cd)
        # scores = q @ k^T (contract head dim of both; no materialized transpose)
        s = jax.lax.dot_general(qh, kh, (((1,), (1,)), ((), ())),
                                preferred_element_type=f32)  # (S, S)
        s = s - jnp.max(s, axis=-1, keepdims=True)
        e = jnp.exp(s)
        r = jnp.sum(e, axis=-1, keepdims=True)               # f32 row sums
        ho = jnp.dot(e.astype(cd), vh, preferred_element_type=f32)   # (S, hd)
        # deferred softmax normalization: scale (S,hd) instead of (S,S)
        ho = ho * pl.reciprocal(r, approx=True)
        heads.append(ho.astype(cd))
    ctx_g = heads[0] if g == 1 else jnp.concatenate(heads, axis=-1)  # (S, g*hd)

    # out-projection contribution of this head group: K = g*hd
    acc_ref[...] += jnp.dot(ctx_g, wo_ref[...], preferred_element_type=f32)       # (S, D)

    @pl.when(grp == n_groups - 1)
    def _finalize():
        attn_out = acc_ref[...] + bo_ref[...]
        # residual + LayerNorm 1 (f32)
        x = src_ref[...].astype(f32) + attn_out
        mu = jnp.mean(x, axis=-1, keepdims=True)
        var = jnp.mean((x - mu) ** 2, axis=-1, keepdims=True)
        x = (x - mu) * jax.lax.rsqrt(var + eps)
        x = x * ln1w_ref[...] + ln1b_ref[...]
        x_ref[...] = x.astype(x_ref.dtype)


# --------------------------------------------------------------------------------------
# Kernel 2: feed-forward (+ residual, LayerNorm2) over flattened (B*S, D) rows.
# grid = (row_tiles, ff_tiles); ff_tiles is a reduction axis with a VMEM accumulator.
# --------------------------------------------------------------------------------------
def _ffn_ln2_kernel(compute_dtype, x_ref, w1_ref, b1_ref, w2_ref, b2_ref,
                    ln2w_ref, ln2b_ref, out_ref, ffacc_ref, x_cd_ref):
    f32 = jnp.float32
    ft = pl.program_id(1)
    n_ft = pl.num_programs(1)
    eps = 1e-5

    @pl.when(ft == 0)
    def _init():
        ffacc_ref[...] = jnp.zeros_like(ffacc_ref)
        x_cd_ref[...] = x_ref[...].astype(compute_dtype)

    h1 = jnp.dot(x_cd_ref[...], w1_ref[...], preferred_element_type=f32) + b1_ref[...]
    h1 = jnp.maximum(h1, 0.0).astype(compute_dtype)          # bf16 right after ReLU
    ffacc_ref[...] += jnp.dot(h1, w2_ref[...], preferred_element_type=f32)

    @pl.when(ft == n_ft - 1)
    def _finalize():
        y = x_ref[...].astype(f32) + ffacc_ref[...] + b2_ref[...]
        mu = jnp.mean(y, axis=-1, keepdims=True)
        var = jnp.mean((y - mu) ** 2, axis=-1, keepdims=True)
        y = (y - mu) * jax.lax.rsqrt(var + eps)
        y = y * ln2w_ref[...] + ln2b_ref[...]
        out_ref[...] = y.astype(out_ref.dtype)


# --------------------------------------------------------------------------------------
# Host-side helpers (layout plumbing, tile selection)
# --------------------------------------------------------------------------------------
def _pick_head_group(nhead, hd, lane_target=256):
    """Largest divisor g of nhead with g*hd <= max(lane_target, hd)."""
    best = 1
    cap = max(lane_target, hd)
    for cand in range(1, nhead + 1):
        if nhead % cand == 0 and cand * hd <= cap:
            best = cand
    return best


def _pick_row_tile(m, target=256):
    if m <= target:
        return m
    best = None
    for cand in range(8, target + 1, 8):
        if m % cand == 0:
            best = cand
    return best if best is not None else m


def _pick_ff_tile(ff, target=1024):
    if ff <= target:
        return ff
    best = None
    for cand in range(128, target + 1, 128):
        if ff % cand == 0:
            best = cand
    return best if best is not None else ff


def _vmem_limit_bytes():
    """Generation-aware VMEM limit: ~75% of physical (48 MiB v7x, 96 MiB v5e/v6e)."""
    try:
        cap = int(pltpu.get_tpu_info().vmem_capacity_bytes)
    except Exception:
        cap = 128 * 1024 * 1024
    return int(min(cap * 3 // 4, 100 * 1024 * 1024))


def _prep_weights(params, nhead, g, compute_dtype):
    """Transpose, split per head-group, fold 1/sqrt(hd) into Q. Pure layout plumbing."""
    D = params["out_proj_w"].shape[0]
    hd = D // nhead
    ng = nhead // g
    gw = g * hd
    scale = 1.0 / math.sqrt(hd)
    f32 = jnp.float32

    wqkv = params["in_proj_w"].astype(f32)                    # (3D, D) torch layout
    bqkv = params["in_proj_b"].reshape(3 * D).astype(f32)

    def grouped_cols(w):                                      # (D_out, D_in) -> (ng, D_in, gw)
        return w.T.reshape(D, ng, gw).transpose(1, 0, 2)

    wq_h = grouped_cols(wqkv[:D]) * scale                     # scale folded into Q
    wk_h = grouped_cols(wqkv[D:2 * D])
    wv_h = grouped_cols(wqkv[2 * D:])

    bq_h = (bqkv[:D] * scale).reshape(ng, 1, gw)
    bk_h = bqkv[D:2 * D].reshape(ng, 1, gw)
    bv_h = bqkv[2 * D:].reshape(ng, 1, gw)

    wo_h = params["out_proj_w"].astype(f32).T.reshape(ng, gw, D)   # (ng, gw, D)

    return {
        "wq_h": wq_h.astype(compute_dtype), "bq_h": bq_h,
        "wk_h": wk_h.astype(compute_dtype), "bk_h": bk_h,
        "wv_h": wv_h.astype(compute_dtype), "bv_h": bv_h,
        "wo_h": wo_h.astype(compute_dtype), "bo": params["out_proj_b"].astype(f32),
        "ln1_w": params["ln1_w"].astype(f32), "ln1_b": params["ln1_b"].astype(f32),
        "w1_t": params["w1"].T.astype(compute_dtype), "b1": params["b1"].astype(f32),
        "w2_t": params["w2"].T.astype(compute_dtype), "b2": params["b2"].astype(f32),
        "ln2_w": params["ln2_w"].astype(f32), "ln2_b": params["ln2_b"].astype(f32),
    }


# --------------------------------------------------------------------------------------
# Wrapper
# --------------------------------------------------------------------------------------
def transformer_encoder_layer(src, params, nhead, pos=None, compute_dtype=jnp.bfloat16):
    """src: (B, S, D) float32. Returns (B, S, D)."""
    B, S, D = src.shape
    FF = params["w1"].shape[0]
    assert D % nhead == 0, "d_model must be divisible by nhead"
    hd = D // nhead

    g = _pick_head_group(nhead, hd)
    ng = nhead // g
    gw = g * hd
    w = _prep_weights(params, nhead, g, compute_dtype)
    has_pos = pos is not None
    vmem_bytes = _vmem_limit_bytes()

    # ---- kernel 1: attention + residual + LN1 ----
    per_batch3 = lambda b, h: (b, 0, 0)
    per_group3 = lambda b, h: (h, 0, 0)
    full2 = lambda b, h: (0, 0)

    in_specs = [pl.BlockSpec((None, S, D), per_batch3)]               # src
    inputs = [src]
    if has_pos:
        in_specs.append(pl.BlockSpec((None, S, D), per_batch3))       # pos
        inputs.append(pos)
    in_specs += [
        pl.BlockSpec((None, D, gw), per_group3),   # q weight (head group)
        pl.BlockSpec((None, 1, gw), per_group3),   # q bias
        pl.BlockSpec((None, D, gw), per_group3),   # k weight
        pl.BlockSpec((None, 1, gw), per_group3),   # k bias
        pl.BlockSpec((None, D, gw), per_group3),   # v weight
        pl.BlockSpec((None, 1, gw), per_group3),   # v bias
        pl.BlockSpec((None, gw, D), per_group3),   # out-proj weight slab
        pl.BlockSpec((1, D), full2),               # out-proj bias
        pl.BlockSpec((1, D), full2),               # norm1.weight
        pl.BlockSpec((1, D), full2),               # norm1.bias
    ]
    inputs += [w["wq_h"], w["bq_h"], w["wk_h"], w["bk_h"], w["wv_h"], w["bv_h"],
               w["wo_h"], w["bo"], w["ln1_w"], w["ln1_b"]]

    attn_kernel = functools.partial(_attn_ln1_kernel, compute_dtype, has_pos, g, hd)
    x = pl.pallas_call(
        attn_kernel,
        out_shape=jax.ShapeDtypeStruct((B, S, D), src.dtype),
        grid_spec=pltpu.PrefetchScalarGridSpec(
            num_scalar_prefetch=0,
            grid=(B, ng),                          # batch parallel, head-groups = reduction
            in_specs=in_specs,
            out_specs=pl.BlockSpec((None, S, D), per_batch3),
            scratch_shapes=[pltpu.VMEM((S, D), jnp.float32),      # out-proj accumulator
                            pltpu.VMEM((S, D), compute_dtype),    # cached (src+pos) bf16
                            pltpu.VMEM((S, D), compute_dtype)]),  # cached src bf16
        compiler_params=pltpu.CompilerParams(
            dimension_semantics=("parallel", "arbitrary"),
            vmem_limit_bytes=vmem_bytes),
    )(*inputs)

    # ---- kernel 2: FFN + residual + LN2 over flattened rows (amortizes weight DMA) ----
    M = B * S
    x2d = x.reshape(M, D)
    rm = _pick_row_tile(M)
    fft = _pick_ff_tile(FF)
    n_rt = M // rm
    n_ft = FF // fft

    row_map = lambda r, f: (r, 0)
    ff_col_map = lambda r, f: (0, f)
    ff_row_map = lambda r, f: (f, 0)
    const_map = lambda r, f: (0, 0)

    ffn_kernel = functools.partial(_ffn_ln2_kernel, compute_dtype)
    out2d = pl.pallas_call(
        ffn_kernel,
        out_shape=jax.ShapeDtypeStruct((M, D), src.dtype),
        grid_spec=pltpu.PrefetchScalarGridSpec(
            num_scalar_prefetch=0,
            grid=(n_rt, n_ft),                     # rows parallel, FF tiles = reduction
            in_specs=[
                pl.BlockSpec((rm, D), row_map),    # x (LN1 output)
                pl.BlockSpec((D, fft), ff_col_map),  # linear1.weight^T tile
                pl.BlockSpec((1, fft), ff_col_map),  # linear1.bias tile
                pl.BlockSpec((fft, D), ff_row_map),  # linear2.weight^T tile
                pl.BlockSpec((1, D), const_map),     # linear2.bias
                pl.BlockSpec((1, D), const_map),     # norm2.weight
                pl.BlockSpec((1, D), const_map),     # norm2.bias
            ],
            out_specs=pl.BlockSpec((rm, D), row_map),
            scratch_shapes=[pltpu.VMEM((rm, D), jnp.float32),     # FFN accumulator
                            pltpu.VMEM((rm, D), compute_dtype)]),  # cached x bf16
        compiler_params=pltpu.CompilerParams(
            dimension_semantics=("parallel", "arbitrary"),
            vmem_limit_bytes=vmem_bytes),
    )(x2d, w["w1_t"], w["b1"], w["w2_t"], w["b2"], w["ln2_w"], w["ln2_b"])

    return out2d.reshape(B, S, D)


# --------------------------------------------------------------------------------------
# Pure-JAX f32 reference (PyTorch forward, eval mode) and test harness
# --------------------------------------------------------------------------------------
def _reference(src, params, nhead, pos=None):
    B, S, D = src.shape
    hd = D // nhead
    qk = src if pos is None else src + pos
    wqkv, bqkv = params["in_proj_w"], params["in_proj_b"][0]
    q = qk @ wqkv[:D].T + bqkv[:D]
    k = qk @ wqkv[D:2 * D].T + bqkv[D:2 * D]
    v = src @ wqkv[2 * D:].T + bqkv[2 * D:]

    def split(x):  # (B,S,D) -> (B,H,S,hd)
        return x.reshape(B, S, nhead, hd).transpose(0, 2, 1, 3)

    qh, kh, vh = split(q), split(k), split(v)
    s = jnp.einsum("bhqd,bhkd->bhqk", qh, kh) / math.sqrt(hd)
    p = jax.nn.softmax(s, axis=-1)
    o = jnp.einsum("bhqk,bhkd->bhqd", p, vh).transpose(0, 2, 1, 3).reshape(B, S, D)
    attn_out = o @ params["out_proj_w"].T + params["out_proj_b"][0]

    def ln(x, wgt, b):
        mu = x.mean(-1, keepdims=True)
        var = ((x - mu) ** 2).mean(-1, keepdims=True)
        return (x - mu) * jax.lax.rsqrt(var + 1e-5) * wgt[0] + b[0]

    x = ln(src + attn_out, params["ln1_w"], params["ln1_b"])
    ff = jnp.maximum(x @ params["w1"].T + params["b1"][0], 0.0) @ params["w2"].T + params["b2"][0]
    return ln(x + ff, params["ln2_w"], params["ln2_b"])


def make_params(key, d_model, nhead, dim_feedforward):
    ks = jax.random.split(key, 8)
    s = 0.05
    return {
        "in_proj_w": s * jax.random.normal(ks[0], (3 * d_model, d_model), jnp.float32),
        "in_proj_b": s * jax.random.normal(ks[1], (1, 3 * d_model), jnp.float32),
        "out_proj_w": s * jax.random.normal(ks[2], (d_model, d_model), jnp.float32),
        "out_proj_b": s * jax.random.normal(ks[3], (1, d_model), jnp.float32),
        "ln1_w": jnp.ones((1, d_model), jnp.float32),
        "ln1_b": jnp.zeros((1, d_model), jnp.float32),
        "w1": s * jax.random.normal(ks[4], (dim_feedforward, d_model), jnp.float32),
        "b1": s * jax.random.normal(ks[5], (1, dim_feedforward), jnp.float32),
        "w2": s * jax.random.normal(ks[6], (d_model, dim_feedforward), jnp.float32),
        "b2": s * jax.random.normal(ks[7], (1, d_model), jnp.float32),
        "ln2_w": jnp.ones((1, d_model), jnp.float32),
        "ln2_b": jnp.zeros((1, d_model), jnp.float32),
    }


if __name__ == "__main__":
    # NOTE: small shapes for the correctness check; perf wins (MXU width, VMEM fit,
    # DMA amortization) only manifest at production sizes (S>=512, D>=512, FF=4D).
    B, S, D, H, FF = 2, 16, 64, 4, 128
    key = jax.random.PRNGKey(0)
    k_x, k_pos, k_par = jax.random.split(key, 3)
    src = jax.random.normal(k_x, (B, S, D), jnp.float32)
    pos = 0.1 * jax.random.normal(k_pos, (B, S, D), jnp.float32)
    params = make_params(k_par, D, H, FF)

    out = transformer_encoder_layer(src, params, H, pos=pos)   # bf16 MXU inputs
    out = jax.block_until_ready(out)

    ref = _reference(src, params, H, pos=pos)
    assert out.shape == (B, S, D)
    max_err = float(jnp.max(jnp.abs(out - ref)))
    # bf16 matmul inputs (f32 accumulation / f32 softmax & LN) -> relaxed tolerance vs f32 ref.
    assert jnp.allclose(out, ref, atol=3e-2, rtol=3e-2), max_err
    print("KERNEL_OK")
</pallas_src>

<mosaic_0001>
module attributes {stable_mosaic.version = 11 : i64} {
  func.func @_attn_ln1_kernel(%arg0: i32, %arg1: i32, %arg2: memref<1x16x64xf32, #tpu.memory_space<vmem>>, %arg3: memref<1x16x64xf32, #tpu.memory_space<vmem>>, %arg4: memref<1x64x64xbf16, #tpu.memory_space<vmem>>, %arg5: memref<1x1x64xf32, #tpu.memory_space<vmem>>, %arg6: memref<1x64x64xbf16, #tpu.memory_space<vmem>>, %arg7: memref<1x1x64xf32, #tpu.memory_space<vmem>>, %arg8: memref<1x64x64xbf16, #tpu.memory_space<vmem>>, %arg9: memref<1x1x64xf32, #tpu.memory_space<vmem>>, %arg10: memref<1x64x64xbf16, #tpu.memory_space<vmem>>, %arg11: memref<1x64xf32, #tpu.memory_space<vmem>>, %arg12: memref<1x64xf32, #tpu.memory_space<vmem>>, %arg13: memref<1x64xf32, #tpu.memory_space<vmem>>, %arg14: memref<1x16x64xf32, #tpu.memory_space<vmem>>, %arg15: memref<16x64xf32, #tpu.memory_space<vmem>>, %arg16: memref<16x64xbf16, #tpu.memory_space<vmem>>, %arg17: memref<16x64xbf16, #tpu.memory_space<vmem>>) attributes {dimension_semantics = [#tpu.dimension_semantics<parallel>, #tpu.dimension_semantics<arbitrary>], iteration_bounds = array<i64: 2, 1>, scalar_prefetch = 0 : i64, scratch_operands = 3 : i64, tpu.core_type = #tpu.core_type<tc>, window_params = [{transform_indices = @transform_0, window_bounds = array<i64: 1, 16, 64>}, {transform_indices = @transform_1, window_bounds = array<i64: 1, 16, 64>}, {transform_indices = @transform_2, window_bounds = array<i64: 1, 64, 64>}, {transform_indices = @transform_3, window_bounds = array<i64: 1, 1, 64>}, {transform_indices = @transform_4, window_bounds = array<i64: 1, 64, 64>}, {transform_indices = @transform_5, window_bounds = array<i64: 1, 1, 64>}, {transform_indices = @transform_6, window_bounds = array<i64: 1, 64, 64>}, {transform_indices = @transform_7, window_bounds = array<i64: 1, 1, 64>}, {transform_indices = @transform_8, window_bounds = array<i64: 1, 64, 64>}, {pipeline_mode = #tpu.pipeline_mode<synchronous>, transform_indices = @transform_9, window_bounds = array<i64: 1, 64>}, {pipeline_mode = #tpu.pipeline_mode<synchronous>, transform_indices = @transform_10, window_bounds = array<i64: 1, 64>}, {pipeline_mode = #tpu.pipeline_mode<synchronous>, transform_indices = @transform_11, window_bounds = array<i64: 1, 64>}, {transform_indices = @transform_12, window_bounds = array<i64: 1, 16, 64>}]} {
    %c0_i32 = arith.constant 0 : i32
    %0 = arith.cmpi eq, %arg1, %c0_i32 : i32
    %1 = arith.extui %0 : i1 to i32
    %c0_i32_0 = arith.constant 0 : i32
    %2 = arith.cmpi ne, %1, %c0_i32_0 : i32
    scf.if %2 {
      %cst_50 = arith.constant 0.000000e+00 : f32
      %116 = vector.broadcast %cst_50 : f32 to vector<16x64xf32>
      %c0_51 = arith.constant 0 : index
      %c0_52 = arith.constant 0 : index
      %117 = vector.load %arg15[%c0_51, %c0_52] : memref<16x64xf32, #tpu.memory_space<vmem>>, vector<16x64xf32>
      tpu.vector_store %arg15[%c0_51, %c0_52], %116 {strides = array<i32>} : memref<16x64xf32, #tpu.memory_space<vmem>>, vector<16x64xf32>,
      %c0_53 = arith.constant 0 : index
      %c0_54 = arith.constant 0 : index
      %c0_55 = arith.constant 0 : index
      %118 = vector.load %arg2[%c0_53, %c0_54, %c0_55] : memref<1x16x64xf32, #tpu.memory_space<vmem>>, vector<1x16x64xf32>
      %119 = vector.shape_cast %118 : vector<1x16x64xf32> to vector<16x64xf32>
      %120 = arith.truncf %119 : vector<16x64xf32> to vector<16x64xbf16>
      %c0_56 = arith.constant 0 : index
      %c0_57 = arith.constant 0 : index
      %121 = vector.load %arg17[%c0_56, %c0_57] : memref<16x64xbf16, #tpu.memory_space<vmem>>, vector<16x64xbf16>
      tpu.vector_store %arg17[%c0_56, %c0_57], %120 {strides = array<i32>} : memref<16x64xbf16, #tpu.memory_space<vmem>>, vector<16x64xbf16>,
      %c0_58 = arith.constant 0 : index
      %c0_59 = arith.constant 0 : index
      %c0_60 = arith.constant 0 : index
      %122 = vector.load %arg3[%c0_58, %c0_59, %c0_60] : memref<1x16x64xf32, #tpu.memory_space<vmem>>, vector<1x16x64xf32>
      %123 = vector.shape_cast %122 : vector<1x16x64xf32> to vector<16x64xf32>
      %124 = arith.addf %119, %123 : vector<16x64xf32>
      %125 = arith.truncf %124 : vector<16x64xf32> to vector<16x64xbf16>
      %c0_61 = arith.constant 0 : index
      %c0_62 = arith.constant 0 : index
      %126 = vector.load %arg16[%c0_61, %c0_62] : memref<16x64xbf16, #tpu.memory_space<vmem>>, vector<16x64xbf16>
      tpu.vector_store %arg16[%c0_61, %c0_62], %125 {strides = array<i32>} : memref<16x64xbf16, #tpu.memory_space<vmem>>, vector<16x64xbf16>,
    } else {
    }
    %c0 = arith.constant 0 : index
    %c0_1 = arith.constant 0 : index
    %3 = vector.load %arg16[%c0, %c0_1] : memref<16x64xbf16, #tpu.memory_space<vmem>>, vector<16x64xbf16>
    %c0_2 = arith.constant 0 : index
    %c0_3 = arith.constant 0 : index
    %4 = vector.load %arg17[%c0_2, %c0_3] : memref<16x64xbf16, #tpu.memory_space<vmem>>, vector<16x64xbf16>
    %c0_4 = arith.constant 0 : index
    %c0_5 = arith.constant 0 : index
    %c0_6 = arith.constant 0 : index
    %5 = vector.load %arg4[%c0_4, %c0_5, %c0_6] : memref<1x64x64xbf16, #tpu.memory_space<vmem>>, vector<1x64x64xbf16>
    %6 = vector.shape_cast %5 : vector<1x64x64xbf16> to vector<64x64xbf16>
    %cst = arith.constant dense<0.000000e+00> : vector<16x64xf32>
    %7 = tpu.matmul %3, %6, %cst {dimension_numbers = #tpu.dot_dimension_numbers<[1], [0], [0], [1], [0, 0, 1, 1], [], []>} : vector<16x64xbf16>, vector<64x64xbf16>, vector<16x64xf32> -> vector<16x64xf32>
    %c0_7 = arith.constant 0 : index
    %c0_8 = arith.constant 0 : index
    %c0_9 = arith.constant 0 : index
    %8 = vector.load %arg5[%c0_7, %c0_8, %c0_9] : memref<1x1x64xf32, #tpu.memory_space<vmem>>, vector<1x1x64xf32>
    %9 = vector.shape_cast %8 : vector<1x1x64xf32> to vector<1x64xf32>
    %10 = vector.broadcast %9 : vector<1x64xf32> to vector<16x64xf32>
    %11 = arith.addf %7, %10 : vector<16x64xf32>
    %c0_10 = arith.constant 0 : index
    %c0_11 = arith.constant 0 : index
    %c0_12 = arith.constant 0 : index
    %12 = vector.load %arg6[%c0_10, %c0_11, %c0_12] : memref<1x64x64xbf16, #tpu.memory_space<vmem>>, vector<1x64x64xbf16>
    %13 = vector.shape_cast %12 : vector<1x64x64xbf16> to vector<64x64xbf16>
    %cst_13 = arith.constant dense<0.000000e+00> : vector<16x64xf32>
    %14 = tpu.matmul %3, %13, %cst_13 {dimension_numbers = #tpu.dot_dimension_numbers<[1], [0], [0], [1], [0, 0, 1, 1], [], []>} : vector<16x64xbf16>, vector<64x64xbf16>, vector<16x64xf32> -> vector<16x64xf32>
    %c0_14 = arith.constant 0 : index
    %c0_15 = arith.constant 0 : index
    %c0_16 = arith.constant 0 : index
    %15 = vector.load %arg7[%c0_14, %c0_15, %c0_16] : memref<1x1x64xf32, #tpu.memory_space<vmem>>, vector<1x1x64xf32>
    %16 = vector.shape_cast %15 : vector<1x1x64xf32> to vector<1x64xf32>
    %17 = vector.broadcast %16 : vector<1x64xf32> to vector<16x64xf32>
    %18 = arith.addf %14, %17 : vector<16x64xf32>
    %c0_17 = arith.constant 0 : index
    %c0_18 = arith.constant 0 : index
    %c0_19 = arith.constant 0 : index
    %19 = vector.load %arg8[%c0_17, %c0_18, %c0_19] : memref<1x64x64xbf16, #tpu.memory_space<vmem>>, vector<1x64x64xbf16>
    %20 = vector.shape_cast %19 : vector<1x64x64xbf16> to vector<64x64xbf16>
    %cst_20 = arith.constant dense<0.000000e+00> : vector<16x64xf32>
    %21 = tpu.matmul %4, %20, %cst_20 {dimension_numbers = #tpu.dot_dimension_numbers<[1], [0], [0], [1], [0, 0, 1, 1], [], []>} : vector<16x64xbf16>, vector<64x64xbf16>, vector<16x64xf32> -> vector<16x64xf32>
    %c0_21 = arith.constant 0 : index
    %c0_22 = arith.constant 0 : index
    %c0_23 = arith.constant 0 : index
    %22 = vector.load %arg9[%c0_21, %c0_22, %c0_23] : memref<1x1x64xf32, #tpu.memory_space<vmem>>, vector<1x1x64xf32>
    %23 = vector.shape_cast %22 : vector<1x1x64xf32> to vector<1x64xf32>
    %24 = vector.broadcast %23 : vector<1x64xf32> to vector<16x64xf32>
    %25 = arith.addf %21, %24 : vector<16x64xf32>
    %26 = vector.extract_strided_slice %11 {offsets = [0, 0], sizes = [16, 16], strides = [1, 1]} : vector<16x64xf32> to vector<16x16xf32>
    %27 = arith.truncf %26 : vector<16x16xf32> to vector<16x16xbf16>
    %28 = vector.extract_strided_slice %18 {offsets = [0, 0], sizes = [16, 16], strides = [1, 1]} : vector<16x64xf32> to vector<16x16xf32>
    %29 = arith.truncf %28 : vector<16x16xf32> to vector<16x16xbf16>
    %30 = vector.extract_strided_slice %25 {offsets = [0, 0], sizes = [16, 16], strides = [1, 1]} : vector<16x64xf32> to vector<16x16xf32>
    %31 = arith.truncf %30 : vector<16x16xf32> to vector<16x16xbf16>
    %cst_24 = arith.constant dense<0.000000e+00> : vector<16x16xf32>
    %32 = tpu.matmul %27, %29, %cst_24 {dimension_numbers = #tpu.dot_dimension_numbers<[1], [1], [0], [0], [0, 0, 1, 0], [], []>} : vector<16x16xbf16>, vector<16x16xbf16>, vector<16x16xf32> -> vector<16x16xf32>
    %cst_25 = arith.constant dense<0xFF800000> : vector<16xf32>
    %33 = vector.multi_reduction <maximumf>, %32, %cst_25 [1] : vector<16x16xf32> to vector<16xf32>
    %34 = vector.shape_cast %33 : vector<16xf32> to vector<16x1xf32>
    %35 = vector.broadcast %34 : vector<16x1xf32> to vector<16x16xf32>
    %36 = arith.subf %32, %35 : vector<16x16xf32>
    %37 = math.exp %36 : vector<16x16xf32>
    %cst_26 = arith.constant dense<0.000000e+00> : vector<16xf32>
    %38 = vector.multi_reduction <add>, %37, %cst_26 [1] : vector<16x16xf32> to vector<16xf32>
    %39 = vector.shape_cast %38 : vector<16xf32> to vector<16x1xf32>
    %40 = arith.truncf %37 : vector<16x16xf32> to vector<16x16xbf16>
    %cst_27 = arith.constant dense<0.000000e+00> : vector<16x16xf32>
    %41 = tpu.matmul %40, %31, %cst_27 {dimension_numbers = #tpu.dot_dimension_numbers<[1], [0], [0], [1], [0, 0, 1, 1], [], []>} : vector<16x16xbf16>, vector<16x16xbf16>, vector<16x16xf32> -> vector<16x16xf32>
    %42 = tpu.reciprocal %39 {approx = true} : vector<16x1xf32> -> vector<16x1xf32>
    %43 = vector.broadcast %42 : vector<16x1xf32> to vector<16x16xf32>
    %44 = arith.mulf %41, %43 : vector<16x16xf32>
    %45 = arith.truncf %44 : vector<16x16xf32> to vector<16x16xbf16>
    %46 = vector.extract_strided_slice %11 {offsets = [0, 16], sizes = [16, 16], strides = [1, 1]} : vector<16x64xf32> to vector<16x16xf32>
    %47 = arith.truncf %46 : vector<16x16xf32> to vector<16x16xbf16>
    %48 = vector.extract_strided_slice %18 {offsets = [0, 16], sizes = [16, 16], strides = [1, 1]} : vector<16x64xf32> to vector<16x16xf32>
    %49 = arith.truncf %48 : vector<16x16xf32> to vector<16x16xbf16>
    %50 = vector.extract_strided_slice %25 {offsets = [0, 16], sizes = [16, 16], strides = [1, 1]} : vector<16x64xf32> to vector<16x16xf32>
    %51 = arith.truncf %50 : vector<16x16xf32> to vector<16x16xbf16>
    %cst_28 = arith.constant dense<0.000000e+00> : vector<16x16xf32>
    %52 = tpu.matmul %47, %49, %cst_28 {dimension_numbers = #tpu.dot_dimension_numbers<[1], [1], [0], [0], [0, 0, 1, 0], [], []>} : vector<16x16xbf16>, vector<16x16xbf16>, vector<16x16xf32> -> vector<16x16xf32>
    %cst_29 = arith.constant dense<0xFF800000> : vector<16xf32>
    %53 = vector.multi_reduction <maximumf>, %52, %cst_29 [1] : vector<16x16xf32> to vector<16xf32>
    %54 = vector.shape_cast %53 : vector<16xf32> to vector<16x1xf32>
    %55 = vector.broadcast %54 : vector<16x1xf32> to vector<16x16xf32>
    %56 = arith.subf %52, %55 : vector<16x16xf32>
    %57 = math.exp %56 : vector<16x16xf32>
    %cst_30 = arith.constant dense<0.000000e+00> : vector<16xf32>
    %58 = vector.multi_reduction <add>, %57, %cst_30 [1] : vector<16x16xf32> to vector<16xf32>
    %59 = vector.shape_cast %58 : vector<16xf32> to vector<16x1xf32>
    %60 = arith.truncf %57 : vector<16x16xf32> to vector<16x16xbf16>
    %cst_31 = arith.constant dense<0.000000e+00> : vector<16x16xf32>
    %61 = tpu.matmul %60, %51, %cst_31 {dimension_numbers = #tpu.dot_dimension_numbers<[1], [0], [0], [1], [0, 0, 1, 1], [], []>} : vector<16x16xbf16>, vector<16x16xbf16>, vector<16x16xf32> -> vector<16x16xf32>
    %62 = tpu.reciprocal %59 {approx = true} : vector<16x1xf32> -> vector<16x1xf32>
    %63 = vector.broadcast %62 : vector<16x1xf32> to vector<16x16xf32>
    %64 = arith.mulf %61, %63 : vector<16x16xf32>
    %65 = arith.truncf %64 : vector<16x16xf32> to vector<16x16xbf16>
    %66 = vector.extract_strided_slice %11 {offsets = [0, 32], sizes = [16, 16], strides = [1, 1]} : vector<16x64xf32> to vector<16x16xf32>
    %67 = arith.truncf %66 : vector<16x16xf32> to vector<16x16xbf16>
    %68 = vector.extract_strided_slice %18 {offsets = [0, 32], sizes = [16, 16], strides = [1, 1]} : vector<16x64xf32> to vector<16x16xf32>
    %69 = arith.truncf %68 : vector<16x16xf32> to vector<16x16xbf16>
    %70 = vector.extract_strided_slice %25 {offsets = [0, 32], sizes = [16, 16], strides = [1, 1]} : vector<16x64xf32> to vector<16x16xf32>
    %71 = arith.truncf %70 : vector<16x16xf32> to vector<16x16xbf16>
    %cst_32 = arith.constant dense<0.000000e+00> : vector<16x16xf32>
    %72 = tpu.matmul %67, %69, %cst_32 {dimension_numbers = #tpu.dot_dimension_numbers<[1], [1], [0], [0], [0, 0, 1, 0], [], []>} : vector<16x16xbf16>, vector<16x16xbf16>, vector<16x16xf32> -> vector<16x16xf32>
    %cst_33 = arith.constant dense<0xFF800000> : vector<16xf32>
    %73 = vector.multi_reduction <maximumf>, %72, %cst_33 [1] : vector<16x16xf32> to vector<16xf32>
    %74 = vector.shape_cast %73 : vector<16xf32> to vector<16x1xf32>
    %75 = vector.broadcast %74 : vector<16x1xf32> to vector<16x16xf32>
    %76 = arith.subf %72, %75 : vector<16x16xf32>
    %77 = math.exp %76 : vector<16x16xf32>
    %cst_34 = arith.constant dense<0.000000e+00> : vector<16xf32>
    %78 = vector.multi_reduction <add>, %77, %cst_34 [1] : vector<16x16xf32> to vector<16xf32>
    %79 = vector.shape_cast %78 : vector<16xf32> to vector<16x1xf32>
    %80 = arith.truncf %77 : vector<16x16xf32> to vector<16x16xbf16>
    %cst_35 = arith.constant dense<0.000000e+00> : vector<16x16xf32>
    %81 = tpu.matmul %80, %71, %cst_35 {dimension_numbers = #tpu.dot_dimension_numbers<[1], [0], [0], [1], [0, 0, 1, 1], [], []>} : vector<16x16xbf16>, vector<16x16xbf16>, vector<16x16xf32> -> vector<16x16xf32>
    %82 = tpu.reciprocal %79 {approx = true} : vector<16x1xf32> -> vector<16x1xf32>
    %83 = vector.broadcast %82 : vector<16x1xf32> to vector<16x16xf32>
    %84 = arith.mulf %81, %83 : vector<16x16xf32>
    %85 = arith.truncf %84 : vector<16x16xf32> to vector<16x16xbf16>
    %86 = vector.extract_strided_slice %11 {offsets = [0, 48], sizes = [16, 16], strides = [1, 1]} : vector<16x64xf32> to vector<16x16xf32>
    %87 = arith.truncf %86 : vector<16x16xf32> to vector<16x16xbf16>
    %88 = vector.extract_strided_slice %18 {offsets = [0, 48], sizes = [16, 16], strides = [1, 1]} : vector<16x64xf32> to vector<16x16xf32>
    %89 = arith.truncf %88 : vector<16x16xf32> to vector<16x16xbf16>
    %90 = vector.extract_strided_slice %25 {offsets = [0, 48], sizes = [16, 16], strides = [1, 1]} : vector<16x64xf32> to vector<16x16xf32>
    %91 = arith.truncf %90 : vector<16x16xf32> to vector<16x16xbf16>
    %cst_36 = arith.constant dense<0.000000e+00> : vector<16x16xf32>
    %92 = tpu.matmul %87, %89, %cst_36 {dimension_numbers = #tpu.dot_dimension_numbers<[1], [1], [0], [0], [0, 0, 1, 0], [], []>} : vector<16x16xbf16>, vector<16x16xbf16>, vector<16x16xf32> -> vector<16x16xf32>
    %cst_37 = arith.constant dense<0xFF800000> : vector<16xf32>
    %93 = vector.multi_reduction <maximumf>, %92, %cst_37 [1] : vector<16x16xf32> to vector<16xf32>
    %94 = vector.shape_cast %93 : vector<16xf32> to vector<16x1xf32>
    %95 = vector.broadcast %94 : vector<16x1xf32> to vector<16x16xf32>
    %96 = arith.subf %92, %95 : vector<16x16xf32>
    %97 = math.exp %96 : vector<16x16xf32>
    %cst_38 = arith.constant dense<0.000000e+00> : vector<16xf32>
    %98 = vector.multi_reduction <add>, %97, %cst_38 [1] : vector<16x16xf32> to vector<16xf32>
    %99 = vector.shape_cast %98 : vector<16xf32> to vector<16x1xf32>
    %100 = arith.truncf %97 : vector<16x16xf32> to vector<16x16xbf16>
    %cst_39 = arith.constant dense<0.000000e+00> : vector<16x16xf32>
    %101 = tpu.matmul %100, %91, %cst_39 {dimension_numbers = #tpu.dot_dimension_numbers<[1], [0], [0], [1], [0, 0, 1, 1], [], []>} : vector<16x16xbf16>, vector<16x16xbf16>, vector<16x16xf32> -> vector<16x16xf32>
    %102 = tpu.reciprocal %99 {approx = true} : vector<16x1xf32> -> vector<16x1xf32>
    %103 = vector.broadcast %102 : vector<16x1xf32> to vector<16x16xf32>
    %104 = arith.mulf %101, %103 : vector<16x16xf32>
    %105 = arith.truncf %104 : vector<16x16xf32> to vector<16x16xbf16>
    %106 = tpu.concatenate %45, %65, %85, %105 in 1 : vector<16x16xbf16>, vector<16x16xbf16>, vector<16x16xbf16>, vector<16x16xbf16> -> vector<16x64xbf16>
    %c0_40 = arith.constant 0 : index
    %c0_41 = arith.constant 0 : index
    %107 = vector.load %arg15[%c0_40, %c0_41] : memref<16x64xf32, #tpu.memory_space<vmem>>, vector<16x64xf32>
    %c0_42 = arith.constant 0 : index
    %c0_43 = arith.constant 0 : index
    %c0_44 = arith.constant 0 : index
    %108 = vector.load %arg10[%c0_42, %c0_43, %c0_44] : memref<1x64x64xbf16, #tpu.memory_space<vmem>>, vector<1x64x64xbf16>
    %109 = vector.shape_cast %108 : vector<1x64x64xbf16> to vector<64x64xbf16>
    %cst_45 = arith.constant dense<0.000000e+00> : vector<16x64xf32>
    %110 = tpu.matmul %106, %109, %cst_45 {dimension_numbers = #tpu.dot_dimension_numbers<[1], [0], [0], [1], [0, 0, 1, 1], [], []>} : vector<16x64xbf16>, vector<64x64xbf16>, vector<16x64xf32> -> vector<16x64xf32>
    %111 = arith.addf %107, %110 : vector<16x64xf32>
    %c0_46 = arith.constant 0 : index
    %c0_47 = arith.constant 0 : index
    %112 = vector.load %arg15[%c0_46, %c0_47] : memref<16x64xf32, #tpu.memory_space<vmem>>, vector<16x64xf32>
    tpu.vector_store %arg15[%c0_46, %c0_47], %111 {strides = array<i32>} : memref<16x64xf32, #tpu.memory_space<vmem>>, vector<16x64xf32>,
    %c0_i32_48 = arith.constant 0 : i32
    %113 = arith.cmpi eq, %arg1, %c0_i32_48 : i32
    %114 = arith.extui %113 : i1 to i32
    %c0_i32_49 = arith.constant 0 : i32
    %115 = arith.cmpi ne, %114, %c0_i32_49 : i32
    scf.if %115 {
      %c0_50 = arith.constant 0 : index
      %c0_51 = arith.constant 0 : index
      %116 = vector.load %arg15[%c0_50, %c0_51] : memref<16x64xf32, #tpu.memory_space<vmem>>, vector<16x64xf32>
      %c0_52 = arith.constant 0 : index
      %c0_53 = arith.constant 0 : index
      %117 = vector.load %arg11[%c0_52, %c0_53] : memref<1x64xf32, #tpu.memory_space<vmem>>, vector<1x64xf32>
      %118 = vector.broadcast %117 : vector<1x64xf32> to vector<16x64xf32>
      %119 = arith.addf %116, %118 : vector<16x64xf32>
      %c0_54 = arith.constant 0 : index
      %c0_55 = arith.constant 0 : index
      %c0_56 = arith.constant 0 : index
      %120 = vector.load %arg2[%c0_54, %c0_55, %c0_56] : memref<1x16x64xf32, #tpu.memory_space<vmem>>, vector<1x16x64xf32>
      %121 = vector.shape_cast %120 : vector<1x16x64xf32> to vector<16x64xf32>
      %122 = arith.addf %121, %119 : vector<16x64xf32>
      %cst_57 = arith.constant dense<0.000000e+00> : vector<16xf32>
      %123 = vector.multi_reduction <add>, %122, %cst_57 [1] : vector<16x64xf32> to vector<16xf32>
      %124 = vector.shape_cast %123 : vector<16xf32> to vector<16x1xf32>
      %cst_58 = arith.constant 6.400000e+01 : f32
      %125 = vector.broadcast %cst_58 : f32 to vector<16x1xf32>
      %126 = arith.divf %124, %125 : vector<16x1xf32>
      %127 = vector.broadcast %126 : vector<16x1xf32> to vector<16x64xf32>
      %128 = arith.subf %122, %127 : vector<16x64xf32>
      %129 = arith.mulf %128, %128 : vector<16x64xf32>
      %cst_59 = arith.constant dense<0.000000e+00> : vector<16xf32>
      %130 = vector.multi_reduction <add>, %129, %cst_59 [1] : vector<16x64xf32> to vector<16xf32>
      %131 = vector.shape_cast %130 : vector<16xf32> to vector<16x1xf32>
      %cst_60 = arith.constant 6.400000e+01 : f32
      %132 = vector.broadcast %cst_60 : f32 to vector<16x1xf32>
      %133 = arith.divf %131, %132 : vector<16x1xf32>
      %134 = vector.broadcast %126 : vector<16x1xf32> to vector<16x64xf32>
      %135 = arith.subf %122, %134 : vector<16x64xf32>
      %cst_61 = arith.constant 9.99999974E-6 : f32
      %136 = vector.broadcast %cst_61 : f32 to vector<16x1xf32>
      %137 = arith.addf %133, %136 : vector<16x1xf32>
      %138 = math.rsqrt %137 : vector<16x1xf32>
      %139 = vector.broadcast %138 : vector<16x1xf32> to vector<16x64xf32>
      %140 = arith.mulf %135, %139 : vector<16x64xf32>
      %c0_62 = arith.constant 0 : index
      %c0_63 = arith.constant 0 : index
      %141 = vector.load %arg12[%c0_62, %c0_63] : memref<1x64xf32, #tpu.memory_space<vmem>>, vector<1x64xf32>
      %142 = vector.broadcast %141 : vector<1x64xf32> to vector<16x64xf32>
      %143 = arith.mulf %140, %142 : vector<16x64xf32>
      %c0_64 = arith.constant 0 : index
      %c0_65 = arith.constant 0 : index
      %144 = vector.load %arg13[%c0_64, %c0_65] : memref<1x64xf32, #tpu.memory_space<vmem>>, vector<1x64xf32>
      %145 = vector.broadcast %144 : vector<1x64xf32> to vector<16x64xf32>
      %146 = arith.addf %143, %145 : vector<16x64xf32>
      %c0_66 = arith.constant 0 : index
      %c0_67 = arith.constant 0 : index
      %c0_68 = arith.constant 0 : index
      %147 = vector.load %arg14[%c0_66, %c0_67, %c0_68] : memref<1x16x64xf32, #tpu.memory_space<vmem>>, vector<1x16x64xf32>
      %148 = vector.shape_cast %147 : vector<1x16x64xf32> to vector<16x64xf32>
      %149 = vector.shape_cast %146 : vector<16x64xf32> to vector<1x16x64xf32>
      tpu.vector_store %arg14[%c0_66, %c0_67, %c0_68], %149 {strides = array<i32>} : memref<1x16x64xf32, #tpu.memory_space<vmem>>, vector<1x16x64xf32>,
    } else {
    }
    return
  }
  func.func @transform_0(%arg0: i32, %arg1: i32) -> (i32, i32, i32) {
    %c0_i32 = arith.constant 0 : i32
    %c0_i32_0 = arith.constant 0 : i32
    %c0_i32_1 = arith.constant 0 : i32
    return %arg0, %c0_i32, %c0_i32_0 : i32, i32, i32
  }
  func.func @transform_1(%arg0: i32, %arg1: i32) -> (i32, i32, i32) {
    %c0_i32 = arith.constant 0 : i32
    %c0_i32_0 = arith.constant 0 : i32
    %c0_i32_1 = arith.constant 0 : i32
    return %arg0, %c0_i32, %c0_i32_0 : i32, i32, i32
  }
  func.func @transform_2(%arg0: i32, %arg1: i32) -> (i32, i32, i32) {
    %c0_i32 = arith.constant 0 : i32
    %c0_i32_0 = arith.constant 0 : i32
    %c0_i32_1 = arith.constant 0 : i32
    return %arg1, %c0_i32, %c0_i32_0 : i32, i32, i32
  }
  func.func @transform_3(%arg0: i32, %arg1: i32) -> (i32, i32, i32) {
    %c0_i32 = arith.constant 0 : i32
    %c0_i32_0 = arith.constant 0 : i32
    %c0_i32_1 = arith.constant 0 : i32
    return %arg1, %c0_i32, %c0_i32_0 : i32, i32, i32
  }
  func.func @transform_4(%arg0: i32, %arg1: i32) -> (i32, i32, i32) {
    %c0_i32 = arith.constant 0 : i32
    %c0_i32_0 = arith.constant 0 : i32
    %c0_i32_1 = arith.constant 0 : i32
    return %arg1, %c0_i32, %c0_i32_0 : i32, i32, i32
  }
  func.func @transform_5(%arg0: i32, %arg1: i32) -> (i32, i32, i32) {
    %c0_i32 = arith.constant 0 : i32
    %c0_i32_0 = arith.constant 0 : i32
    %c0_i32_1 = arith.constant 0 : i32
    return %arg1, %c0_i32, %c0_i32_0 : i32, i32, i32
  }
  func.func @transform_6(%arg0: i32, %arg1: i32) -> (i32, i32, i32) {
    %c0_i32 = arith.constant 0 : i32
    %c0_i32_0 = arith.constant 0 : i32
    %c0_i32_1 = arith.constant 0 : i32
    return %arg1, %c0_i32, %c0_i32_0 : i32, i32, i32
  }
  func.func @transform_7(%arg0: i32, %arg1: i32) -> (i32, i32, i32) {
    %c0_i32 = arith.constant 0 : i32
    %c0_i32_0 = arith.constant 0 : i32
    %c0_i32_1 = arith.constant 0 : i32
    return %arg1, %c0_i32, %c0_i32_0 : i32, i32, i32
  }
  func.func @transform_8(%arg0: i32, %arg1: i32) -> (i32, i32, i32) {
    %c0_i32 = arith.constant 0 : i32
    %c0_i32_0 = arith.constant 0 : i32
    %c0_i32_1 = arith.constant 0 : i32
    return %arg1, %c0_i32, %c0_i32_0 : i32, i32, i32
  }
  func.func @transform_9(%arg0: i32, %arg1: i32) -> (i32, i32) {
    %c0_i32 = arith.constant 0 : i32
    %c0_i32_0 = arith.constant 0 : i32
    %c0_i32_1 = arith.constant 0 : i32
    return %c0_i32, %c0_i32_0 : i32, i32
  }
  func.func @transform_10(%arg0: i32, %arg1: i32) -> (i32, i32) {
    %c0_i32 = arith.constant 0 : i32
    %c0_i32_0 = arith.constant 0 : i32
    %c0_i32_1 = arith.constant 0 : i32
    return %c0_i32, %c0_i32_0 : i32, i32
  }
  func.func @transform_11(%arg0: i32, %arg1: i32) -> (i32, i32) {
    %c0_i32 = arith.constant 0 : i32
    %c0_i32_0 = arith.constant 0 : i32
    %c0_i32_1 = arith.constant 0 : i32
    return %c0_i32, %c0_i32_0 : i32, i32
  }
  func.func @transform_12(%arg0: i32, %arg1: i32) -> (i32, i32, i32) {
    %c0_i32 = arith.constant 0 : i32
    %c0_i32_0 = arith.constant 0 : i32
    %c0_i32_1 = arith.constant 0 : i32
    return %arg0, %c0_i32, %c0_i32_0 : i32, i32, i32
  }
}

</mosaic_0001>

<llo_original>
// kernel: tpu_custom_call.1
$region0: #{tpu_custom_call.1}
  #allocation0 [shape = 'u32[]', space=smem, size = 0x4, offset = 0x4, fixed_abs, tag = 'smem constant byte address 0x4 - core index']
  #allocation1 [shape = 'u32[72,128]{1,0:T(1,128)}', space=vmem, size = 0x9000, scoped, tag = 'internal scratch']
  #allocation2 [shape = 'f32[16,64]{1,0:T(8,128)}', space=vmem, size = 0x2000, scoped, tag = 'scratch operand']
  #allocation3 [shape = 'bf16[16,64]{1,0:T(8,128)(2,1)}', space=vmem, size = 0x1000, scoped, tag = 'scratch operand']
  #allocation4 [shape = 'bf16[16,64]{1,0:T(8,128)(2,1)}', space=vmem, size = 0x1000, scoped, tag = 'scratch operand']
  %s0 = inlined_call_operand.hbm [shape: f32[2,16,64], index: 0, kind: input, shape index: {}]
  %s1 = inlined_call_operand.hbm [shape: f32[2,16,64], index: 1, kind: input, shape index: {}]
  %s2 = inlined_call_operand.hbm [shape: bf16[1,64,64], index: 2, kind: input, shape index: {}]
  %s3 = inlined_call_operand.vmem [shape: f32[1,1,64], index: 3, kind: input, shape index: {}]
  %s4 = inlined_call_operand.hbm [shape: bf16[1,64,64], index: 4, kind: input, shape index: {}]
  %s5 = inlined_call_operand.vmem [shape: f32[1,1,64], index: 5, kind: input, shape index: {}]
  %s6 = inlined_call_operand.hbm [shape: bf16[1,64,64], index: 6, kind: input, shape index: {}]
  %s7 = inlined_call_operand.vmem [shape: f32[1,1,64], index: 7, kind: input, shape index: {}]
  %s8 = inlined_call_operand.hbm [shape: bf16[1,64,64], index: 8, kind: input, shape index: {}]
  %s9 = inlined_call_operand.vmem [shape: f32[1,64], index: 9, kind: input, shape index: {}]
  %s10 = inlined_call_operand.vmem [shape: f32[1,64], index: 10, kind: input, shape index: {}]
  %s11 = inlined_call_operand.vmem [shape: f32[1,64], index: 11, kind: input, shape index: {}]
  %s12 = inlined_call_operand.hbm [shape: f32[2,16,64], index: 12, kind: output, shape index: {}]
  %s13 = sld [smem:[#allocation0]]
  $region113: #{tpu_custom_call.1} parent=0
    _
  %s15 = ssub.s32 1, %s13
  %s16 = scalar_select 0, %s15, %s13
  $region1: #{tpu_custom_call.1} parent=0
    #allocation5 [shape = 'u8[16384]{0}', space=vmem, size = 0x4000, scoped, tag = 'input window, operand 0']
    #allocation6 [shape = 's32[2]{0}', space=sflag, size = 0x8, scoped, tag = 'scoped memory for tpu_custom_call.1']
    #allocation7 [shape = 's32[2]{0}', space=sflag, size = 0x8, scoped, tag = 'scoped memory for tpu_custom_call.1']
    #allocation8 [shape = 'u8[16384]{0}', space=vmem, size = 0x4000, scoped, tag = 'input window, operand 1']
    #allocation9 [shape = 's32[2]{0}', space=sflag, size = 0x8, scoped, tag = 'scoped memory for tpu_custom_call.1']
    #allocation10 [shape = 'u8[16384]{0}', space=vmem, size = 0x4000, scoped, tag = 'input window, operand 2, single buffered']
    #allocation11 [shape = 'u8[16384]{0}', space=vmem, size = 0x4000, scoped, tag = 'input window, operand 4, single buffered']
    #allocation12 [shape = 's32[1]{0}', space=sflag, size = 0x4, scoped, tag = 'scoped memory for tpu_custom_call.1']
    #allocation13 [shape = 'u8[16384]{0}', space=vmem, size = 0x4000, scoped, tag = 'input window, operand 6, single buffered']
    #allocation14 [shape = 'u8[16384]{0}', space=vmem, size = 0x4000, scoped, tag = 'input window, operand 8, single buffered']
    #allocation15 [shape = 's32[1]{0}', space=sflag, size = 0x4, scoped, tag = 'scoped memory for tpu_custom_call.1']
    #allocation16 [shape = 'u8[16384]{0}', space=vmem, size = 0x4000, scoped, tag = 'output window, operand 0']
    %17 = vsyncpa [#allocation6], 0
    %s18 = scalar_lea.sflag [#allocation6], 1
    %19 = vsyncpa %s18, 0
    %20 = vsyncpa [#allocation9], 0
    %s21 = scalar_lea.sflag [#allocation9], 1
    %22 = vsyncpa %s21, 0
    %23 = vsyncpa [#allocation12], 0
    %24 = vsyncpa [#allocation15], 0
    %25 = vsyncpa [#allocation7], 0
    %s26 = scalar_lea.sflag [#allocation7], 1
    %27 = vsyncpa %s26, 0
    loop: start=0, step=1, limit=4
    $region2: #{tpu_custom_call.1} parent=1 // loop_pre_header
      _
    $region3: #{tpu_custom_call.1} parent=1 // loop_header
      %s29 = sphi 0, %s33
      %p30 = scmp.ge.s32.totalorder %s29, 4
      %s36 = sphi 0, %s48
      %s37 = sphi 0, %s44
      %s38 = sphi 0, %s36
      %s39 = sphi 0, %s37
      %s40 = sphi 0, %s38
      %s41 = sphi 0, %s39
      %s51 = sphi 0, %s53
      %s54 = sphi 0, %s51
      %s55 = sphi 0, %s54
      %s71 = sphi 0, %s55
      %s77 = sphi 0, %s79
      %s80 = sphi 0, %s77
      %s81 = sphi 0, %s80
      %s97 = sphi 0, %s81
      %s103 = sphi 0, %s105
      %s106 = sphi 0, %s103
      %s107 = sphi 0, %s106
      %s123 = sphi 0, %s107
      %s129 = sphi 0, %s131
      %s132 = sphi 0, %s129
      %s133 = sphi 0, %s132
      %s149 = sphi 0, %s133
      %s155 = sphi 0, %s157
      %s158 = sphi 0, %s155
      %s159 = sphi 0, %s158
      %s175 = sphi 0, %s159
      %s181 = sphi 0, %s183
      %s184 = sphi 0, %s181
      %s185 = sphi 0, %s184
      %s201 = sphi 0, %s185
      %s207 = sphi 0, %s209
      %s210 = sphi 0, %s207
      %s211 = sphi 0, %s210
      %s227 = sphi 0, %s211
      %s233 = sphi 0, %s235
      %s236 = sphi 0, %s233
      %s237 = sphi 0, %s236
      %s253 = sphi 0, %s237
      %s259 = sphi 0, %s261
      %s262 = sphi 0, %s259
      %s263 = sphi 0, %s262
      %s279 = sphi 0, %s263
      %s283 = sphi 0, %s283
      %s285 = sphi 0, %s283
      %s286 = sphi 0, %s285
      %s300 = sphi 0, %s286
      %s304 = sphi 0, %s304
      %s306 = sphi 0, %s304
      %s307 = sphi 0, %s306
      %s321 = sphi 0, %s307
      %s325 = sphi 0, %s325
      %s327 = sphi 0, %s325
      %s328 = sphi 0, %s327
      %s342 = sphi 0, %s328
      %s348 = sphi 0, %s350
      %s351 = sphi 0, %s348
      %s352 = sphi 0, %s351
      %s368 = sphi 0, %s352
    $region4: #{tpu_custom_call.1} parent=1 // loop_header_branch
      %32 = sbr.rel (%p30) target = $region8
    $region5: #{tpu_custom_call.1} parent=1 // loop_body
      %s34 = ssub.s32 %s29, 1
      %s35 = ssub.s32 %s29, 2
      %s42 = sadd.s32 1, %s37
      %p43 = scmp.ge.s32.totalorder %s42, 1
      %s44 = scalar_select %p43, 0, %s42
      %s45 = sadd.s32 1, %s36
      %s46 = scalar_select %p43, %s45, %s36
      %p47 = scmp.ge.s32.totalorder %s46, 2
      %s48 = scalar_select %p47, 0, %s46
      %s49 = ssub.s32 %s36, %s48
      %p50 = scmp.eq.s32.totalorder %s49, 0
      %s52 = sadd.s32 %s51, 1
      %s53 = scalar_select %p50, %s51, %s52
      %p56 = pneg %p50
      %p57 = scmp.eq.s32.totalorder %s29, 1
      %p58 = por %p56, %p57
      %p59 = scmp.ne.s32.totalorder %s51, %s54
      %p60 = scmp.eq.s32.totalorder %s29, 0
      %p61 = por %p59, %p60
      %p62 = scmp.ne.s32.totalorder %s51, %s54
      %p63 = scmp.eq.s32.totalorder %s34, 1
      %p64 = por %p62, %p63
      %p65 = scmp.ne.s32.totalorder %s54, %s55
      %p66 = scmp.eq.s32.totalorder %s34, 0
      %p67 = por %p65, %p66
      %p68 = scmp.ne.s32.totalorder %s54, %s55
      %p69 = scmp.eq.s32.totalorder %s35, 1
      %p70 = por %p68, %p69
      %p72 = scmp.ne.s32.totalorder %s55, %s71
      %p73 = scmp.eq.s32.totalorder %s35, 0
      %p74 = por %p72, %p73
      %s75 = ssub.s32 %s36, %s48
      %p76 = scmp.eq.s32.totalorder %s75, 0
      %s78 = sadd.s32 %s77, 1
      %s79 = scalar_select %p76, %s77, %s78
      %p82 = pneg %p76
      %p83 = scmp.eq.s32.totalorder %s29, 1
      %p84 = por %p82, %p83
      %p85 = scmp.ne.s32.totalorder %s77, %s80
      %p86 = scmp.eq.s32.totalorder %s29, 0
      %p87 = por %p85, %p86
      %p88 = scmp.ne.s32.totalorder %s77, %s80
      %p89 = scmp.eq.s32.totalorder %s34, 1
      %p90 = por %p88, %p89
      %p91 = scmp.ne.s32.totalorder %s80, %s81
      %p92 = scmp.eq.s32.totalorder %s34, 0
      %p93 = por %p91, %p92
      %p94 = scmp.ne.s32.totalorder %s80, %s81
      %p95 = scmp.eq.s32.totalorder %s35, 1
      %p96 = por %p94, %p95
      %p98 = scmp.ne.s32.totalorder %s81, %s97
      %p99 = scmp.eq.s32.totalorder %s35, 0
      %p100 = por %p98, %p99
      %s101 = ssub.s32 %s37, %s44
      %p102 = scmp.eq.s32.totalorder %s101, 0
      %s104 = sadd.s32 %s103, 1
      %s105 = scalar_select %p102, %s103, %s104
      %p108 = pneg %p102
      %p109 = scmp.eq.s32.totalorder %s29, 1
      %p110 = por %p108, %p109
      %p111 = scmp.ne.s32.totalorder %s103, %s106
      %p112 = scmp.eq.s32.totalorder %s29, 0
      %p113 = por %p111, %p112
      %p114 = scmp.ne.s32.totalorder %s103, %s106
      %p115 = scmp.eq.s32.totalorder %s34, 1
      %p116 = por %p114, %p115
      %p117 = scmp.ne.s32.totalorder %s106, %s107
      %p118 = scmp.eq.s32.totalorder %s34, 0
      %p119 = por %p117, %p118
      %p120 = scmp.ne.s32.totalorder %s106, %s107
      %p121 = scmp.eq.s32.totalorder %s35, 1
      %p122 = por %p120, %p121
      %p124 = scmp.ne.s32.totalorder %s107, %s123
      %p125 = scmp.eq.s32.totalorder %s35, 0
      %p126 = por %p124, %p125
      %s127 = ssub.s32 %s37, %s44
      %p128 = scmp.eq.s32.totalorder %s127, 0
      %s130 = sadd.s32 %s129, 1
      %s131 = scalar_select %p128, %s129, %s130
      %p134 = pneg %p128
      %p135 = scmp.eq.s32.totalorder %s29, 1
      %p136 = por %p134, %p135
      %p137 = scmp.ne.s32.totalorder %s129, %s132
      %p138 = scmp.eq.s32.totalorder %s29, 0
      %p139 = por %p137, %p138
      %p140 = scmp.ne.s32.totalorder %s129, %s132
      %p141 = scmp.eq.s32.totalorder %s34, 1
      %p142 = por %p140, %p141
      %p143 = scmp.ne.s32.totalorder %s132, %s133
      %p144 = scmp.eq.s32.totalorder %s34, 0
      %p145 = por %p143, %p144
      %p146 = scmp.ne.s32.totalorder %s132, %s133
      %p147 = scmp.eq.s32.totalorder %s35, 1
      %p148 = por %p146, %p147
      %p150 = scmp.ne.s32.totalorder %s133, %s149
      %p151 = scmp.eq.s32.totalorder %s35, 0
      %p152 = por %p150, %p151
      %s153 = ssub.s32 %s37, %s44
      %p154 = scmp.eq.s32.totalorder %s153, 0
      %s156 = sadd.s32 %s155, 1
      %s157 = scalar_select %p154, %s155, %s156
      %p160 = pneg %p154
      %p161 = scmp.eq.s32.totalorder %s29, 1
      %p162 = por %p160, %p161
      %p163 = scmp.ne.s32.totalorder %s155, %s158
      %p164 = scmp.eq.s32.totalorder %s29, 0
      %p165 = por %p163, %p164
      %p166 = scmp.ne.s32.totalorder %s155, %s158
      %p167 = scmp.eq.s32.totalorder %s34, 1
      %p168 = por %p166, %p167
      %p169 = scmp.ne.s32.totalorder %s158, %s159
      %p170 = scmp.eq.s32.totalorder %s34, 0
      %p171 = por %p169, %p170
      %p172 = scmp.ne.s32.totalorder %s158, %s159
      %p173 = scmp.eq.s32.totalorder %s35, 1
      %p174 = por %p172, %p173
      %p176 = scmp.ne.s32.totalorder %s159, %s175
      %p177 = scmp.eq.s32.totalorder %s35, 0
      %p178 = por %p176, %p177
      %s179 = ssub.s32 %s37, %s44
      %p180 = scmp.eq.s32.totalorder %s179, 0
      %s182 = sadd.s32 %s181, 1
      %s183 = scalar_select %p180, %s181, %s182
      %p186 = pneg %p180
      %p187 = scmp.eq.s32.totalorder %s29, 1
      %p188 = por %p186, %p187
      %p189 = scmp.ne.s32.totalorder %s181, %s184
      %p190 = scmp.eq.s32.totalorder %s29, 0
      %p191 = por %p189, %p190
      %p192 = scmp.ne.s32.totalorder %s181, %s184
      %p193 = scmp.eq.s32.totalorder %s34, 1
      %p194 = por %p192, %p193
      %p195 = scmp.ne.s32.totalorder %s184, %s185
      %p196 = scmp.eq.s32.totalorder %s34, 0
      %p197 = por %p195, %p196
      %p198 = scmp.ne.s32.totalorder %s184, %s185
      %p199 = scmp.eq.s32.totalorder %s35, 1
      %p200 = por %p198, %p199
      %p202 = scmp.ne.s32.totalorder %s185, %s201
      %p203 = scmp.eq.s32.totalorder %s35, 0
      %p204 = por %p202, %p203
      %s205 = ssub.s32 %s37, %s44
      %p206 = scmp.eq.s32.totalorder %s205, 0
      %s208 = sadd.s32 %s207, 1
      %s209 = scalar_select %p206, %s207, %s208
      %p212 = pneg %p206
      %p213 = scmp.eq.s32.totalorder %s29, 1
      %p214 = por %p212, %p213
      %p215 = scmp.ne.s32.totalorder %s207, %s210
      %p216 = scmp.eq.s32.totalorder %s29, 0
      %p217 = por %p215, %p216
      %p218 = scmp.ne.s32.totalorder %s207, %s210
      %p219 = scmp.eq.s32.totalorder %s34, 1
      %p220 = por %p218, %p219
      %p221 = scmp.ne.s32.totalorder %s210, %s211
      %p222 = scmp.eq.s32.totalorder %s34, 0
      %p223 = por %p221, %p222
      %p224 = scmp.ne.s32.totalorder %s210, %s211
      %p225 = scmp.eq.s32.totalorder %s35, 1
      %p226 = por %p224, %p225
      %p228 = scmp.ne.s32.totalorder %s211, %s227
      %p229 = scmp.eq.s32.totalorder %s35, 0
      %p230 = por %p228, %p229
      %s231 = ssub.s32 %s37, %s44
      %p232 = scmp.eq.s32.totalorder %s231, 0
      %s234 = sadd.s32 %s233, 1
      %s235 = scalar_select %p232, %s233, %s234
      %p238 = pneg %p232
      %p239 = scmp.eq.s32.totalorder %s29, 1
      %p240 = por %p238, %p239
      %p241 = scmp.ne.s32.totalorder %s233, %s236
      %p242 = scmp.eq.s32.totalorder %s29, 0
      %p243 = por %p241, %p242
      %p244 = scmp.ne.s32.totalorder %s233, %s236
      %p245 = scmp.eq.s32.totalorder %s34, 1
      %p246 = por %p244, %p245
      %p247 = scmp.ne.s32.totalorder %s236, %s237
      %p248 = scmp.eq.s32.totalorder %s34, 0
      %p249 = por %p247, %p248
      %p250 = scmp.ne.s32.totalorder %s236, %s237
      %p251 = scmp.eq.s32.totalorder %s35, 1
      %p252 = por %p250, %p251
      %p254 = scmp.ne.s32.totalorder %s237, %s253
      %p255 = scmp.eq.s32.totalorder %s35, 0
      %p256 = por %p254, %p255
      %s257 = ssub.s32 %s37, %s44
      %p258 = scmp.eq.s32.totalorder %s257, 0
      %s260 = sadd.s32 %s259, 1
      %s261 = scalar_select %p258, %s259, %s260
      %p264 = pneg %p258
      %p265 = scmp.eq.s32.totalorder %s29, 1
      %p266 = por %p264, %p265
      %p267 = scmp.ne.s32.totalorder %s259, %s262
      %p268 = scmp.eq.s32.totalorder %s29, 0
      %p269 = por %p267, %p268
      %p270 = scmp.ne.s32.totalorder %s259, %s262
      %p271 = scmp.eq.s32.totalorder %s34, 1
      %p272 = por %p270, %p271
      %p273 = scmp.ne.s32.totalorder %s262, %s263
      %p274 = scmp.eq.s32.totalorder %s34, 0
      %p275 = por %p273, %p274
      %p276 = scmp.ne.s32.totalorder %s262, %s263
      %p277 = scmp.eq.s32.totalorder %s35, 1
      %p278 = por %p276, %p277
      %p280 = scmp.ne.s32.totalorder %s263, %s279
      %p281 = scmp.eq.s32.totalorder %s35, 0
      %p282 = por %p280, %p281
      %s284 = sadd.s32 %s283, 1
      %p287 = scmp.eq.s32.totalorder %s29, 1
      %p288 = scmp.ne.s32.totalorder %s283, %s285
      %p289 = scmp.eq.s32.totalorder %s29, 0
      %p290 = por %p288, %p289
      %p291 = scmp.ne.s32.totalorder %s283, %s285
      %p292 = scmp.eq.s32.totalorder %s34, 1
      %p293 = por %p291, %p292
      %p294 = scmp.ne.s32.totalorder %s285, %s286
      %p295 = scmp.eq.s32.totalorder %s34, 0
      %p296 = por %p294, %p295
      %p297 = scmp.ne.s32.totalorder %s285, %s286
      %p298 = scmp.eq.s32.totalorder %s35, 1
      %p299 = por %p297, %p298
      %p301 = scmp.ne.s32.totalorder %s286, %s300
      %p302 = scmp.eq.s32.totalorder %s35, 0
      %p303 = por %p301, %p302
      %s305 = sadd.s32 %s304, 1
      %p308 = scmp.eq.s32.totalorder %s29, 1
      %p309 = scmp.ne.s32.totalorder %s304, %s306
      %p310 = scmp.eq.s32.totalorder %s29, 0
      %p311 = por %p309, %p310
      %p312 = scmp.ne.s32.totalorder %s304, %s306
      %p313 = scmp.eq.s32.totalorder %s34, 1
      %p314 = por %p312, %p313
      %p315 = scmp.ne.s32.totalorder %s306, %s307
      %p316 = scmp.eq.s32.totalorder %s34, 0
      %p317 = por %p315, %p316
      %p318 = scmp.ne.s32.totalorder %s306, %s307
      %p319 = scmp.eq.s32.totalorder %s35, 1
      %p320 = por %p318, %p319
      %p322 = scmp.ne.s32.totalorder %s307, %s321
      %p323 = scmp.eq.s32.totalorder %s35, 0
      %p324 = por %p322, %p323
      %s326 = sadd.s32 %s325, 1
      %p329 = scmp.eq.s32.totalorder %s29, 1
      %p330 = scmp.ne.s32.totalorder %s325, %s327
      %p331 = scmp.eq.s32.totalorder %s29, 0
      %p332 = por %p330, %p331
      %p333 = scmp.ne.s32.totalorder %s325, %s327
      %p334 = scmp.eq.s32.totalorder %s34, 1
      %p335 = por %p333, %p334
      %p336 = scmp.ne.s32.totalorder %s327, %s328
      %p337 = scmp.eq.s32.totalorder %s34, 0
      %p338 = por %p336, %p337
      %p339 = scmp.ne.s32.totalorder %s327, %s328
      %p340 = scmp.eq.s32.totalorder %s35, 1
      %p341 = por %p339, %p340
      %p343 = scmp.ne.s32.totalorder %s328, %s342
      %p344 = scmp.eq.s32.totalorder %s35, 0
      %p345 = por %p343, %p344
      %s346 = ssub.s32 %s36, %s48
      %p347 = scmp.eq.s32.totalorder %s346, 0
      %s349 = sadd.s32 %s348, 1
      %s350 = scalar_select %p347, %s348, %s349
      %p353 = pneg %p347
      %p354 = scmp.eq.s32.totalorder %s29, 1
      %p355 = por %p353, %p354
      %p356 = scmp.ne.s32.totalorder %s348, %s351
      %p357 = scmp.eq.s32.totalorder %s29, 0
      %p358 = por %p356, %p357
      %p359 = scmp.ne.s32.totalorder %s348, %s351
      %p360 = scmp.eq.s32.totalorder %s34, 1
      %p361 = por %p359, %p360
      %p362 = scmp.ne.s32.totalorder %s351, %s352
      %p363 = scmp.eq.s32.totalorder %s34, 0
      %p364 = por %p362, %p363
      %p365 = scmp.ne.s32.totalorder %s351, %s352
      %p366 = scmp.eq.s32.totalorder %s35, 1
      %p367 = por %p365, %p366
      %p369 = scmp.ne.s32.totalorder %s352, %s368
      %p370 = scmp.eq.s32.totalorder %s35, 0
      %p371 = por %p369, %p370
      %p372 = scmp.le.s32.totalorder 1, %s29
      %p373 = scmp.lt.s32.totalorder %s29, 3
      %p374 = pnand %p372, %p373
      %p375 = pneg %p374
      // Predicated region
      $region9: #{tpu_custom_call.1} parent=5 // pred_check
        _
      $region10: #{tpu_custom_call.1} parent=5 // pred_check_branch
        %377 = sbr.rel (%p374) target = $region12
      $region11: #{tpu_custom_call.1} parent=5 // pred_region
        %s378 = ssub.s32 %s29, 1
        // Predicated region
        $region13: #{tpu_custom_call.1} parent=11 // pred_check
          %p379 = pneg %p119
        $region14: #{tpu_custom_call.1} parent=11 // pred_check_branch
          %381 = sbr.rel (%p379) target = $region16
        $region15: #{tpu_custom_call.1} parent=11 // pred_region
          %383 = vsyncadd [#allocation9], 0
          %s384 = smul.addr %s39, 8
          %s385 = smul.addr %s384, 4
          %s386 = scalar_lea.hbm %s2, %s385
          %s387 = sshll.u32 %s386, 4
          %s388 = int_to_ptr.hbm [resolvable:$true] %s387
          %s389 = sshll.u32 [#allocation10], 4
          %s390 = int_to_ptr.vmem [resolvable:$true] %s389
          %395 = dma.hbm_to_vmem [thread:$0]  %s388, 512, %s390, [#allocation9], 64, 64, 4
        $region16: #{tpu_custom_call.1} parent=11 // pred_fallthru
          _
        // Predicated region
        $region17: #{tpu_custom_call.1} parent=11 // pred_check
          %p396 = pneg %p145
        $region18: #{tpu_custom_call.1} parent=11 // pred_check_branch
          %398 = sbr.rel (%p396) target = $region20
        $region19: #{tpu_custom_call.1} parent=11 // pred_region
          %p399 = scmp.lt.s32.totalorder %s39, 0
          %s400 = scalar_select %p399, %s39, 0
          %s401 = scalar_lea.vmem %s3, %s400
        $region20: #{tpu_custom_call.1} parent=11 // pred_fallthru
          _
        // Predicated region
        $region21: #{tpu_custom_call.1} parent=11 // pred_check
          %p402 = pneg %p171
        $region22: #{tpu_custom_call.1} parent=11 // pred_check_branch
          %404 = sbr.rel (%p402) target = $region24
        $region23: #{tpu_custom_call.1} parent=11 // pred_region
          %406 = vsyncadd [#allocation12], 0
          %s407 = smul.addr %s39, 8
          %s408 = smul.addr %s407, 4
          %s409 = scalar_lea.hbm %s4, %s408
          %s410 = sshll.u32 %s409, 4
          %s411 = int_to_ptr.hbm [resolvable:$true] %s410
          %s412 = sshll.u32 [#allocation11], 4
          %s413 = int_to_ptr.vmem [resolvable:$true] %s412
          %418 = dma.hbm_to_vmem [thread:$0]  %s411, 512, %s413, [#allocation12], 64, 64, 4
        $region24: #{tpu_custom_call.1} parent=11 // pred_fallthru
          _
        // Predicated region
        $region25: #{tpu_custom_call.1} parent=11 // pred_check
          %p419 = pneg %p197
        $region26: #{tpu_custom_call.1} parent=11 // pred_check_branch
          %421 = sbr.rel (%p419) target = $region28
        $region27: #{tpu_custom_call.1} parent=11 // pred_region
          %p422 = scmp.lt.s32.totalorder %s39, 0
          %s423 = scalar_select %p422, %s39, 0
          %s424 = scalar_lea.vmem %s5, %s423
        $region28: #{tpu_custom_call.1} parent=11 // pred_fallthru
          _
        // Predicated region
        $region29: #{tpu_custom_call.1} parent=11 // pred_check
          %p425 = pneg %p223
        $region30: #{tpu_custom_call.1} parent=11 // pred_check_branch
          %427 = sbr.rel (%p425) target = $region32
        $region31: #{tpu_custom_call.1} parent=11 // pred_region
          %429 = vsyncadd [#allocation12], 0
          %s430 = smul.addr %s39, 8
          %s431 = smul.addr %s430, 4
          %s432 = scalar_lea.hbm %s6, %s431
          %s433 = sshll.u32 %s432, 4
          %s434 = int_to_ptr.hbm [resolvable:$true] %s433
          %s435 = sshll.u32 [#allocation13], 4
          %s436 = int_to_ptr.vmem [resolvable:$true] %s435
          %441 = dma.hbm_to_vmem [thread:$0]  %s434, 512, %s436, [#allocation12], 64, 64, 4
        $region32: #{tpu_custom_call.1} parent=11 // pred_fallthru
          _
        // Predicated region
        $region33: #{tpu_custom_call.1} parent=11 // pred_check
          %p442 = pneg %p249
        $region34: #{tpu_custom_call.1} parent=11 // pred_check_branch
          %444 = sbr.rel (%p442) target = $region36
        $region35: #{tpu_custom_call.1} parent=11 // pred_region
          %p445 = scmp.lt.s32.totalorder %s39, 0
          %s446 = scalar_select %p445, %s39, 0
          %s447 = scalar_lea.vmem %s7, %s446
        $region36: #{tpu_custom_call.1} parent=11 // pred_fallthru
          _
        // Predicated region
        $region37: #{tpu_custom_call.1} parent=11 // pred_check
          %p448 = pneg %p275
        $region38: #{tpu_custom_call.1} parent=11 // pred_check_branch
          %450 = sbr.rel (%p448) target = $region40
        $region39: #{tpu_custom_call.1} parent=11 // pred_region
          %452 = vsyncadd [#allocation15], 0
          %s453 = smul.addr %s39, 8
          %s454 = smul.addr %s453, 4
          %s455 = scalar_lea.hbm %s8, %s454
          %s456 = sshll.u32 %s455, 4
          %s457 = int_to_ptr.hbm [resolvable:$true] %s456
          %s458 = sshll.u32 [#allocation14], 4
          %s459 = int_to_ptr.vmem [resolvable:$true] %s458
          %464 = dma.hbm_to_vmem [thread:$0]  %s457, 512, %s459, [#allocation15], 64, 64, 4
        $region40: #{tpu_custom_call.1} parent=11 // pred_fallthru
          _
        // Predicated region
        $region41: #{tpu_custom_call.1} parent=11 // pred_check
          %p465 = pneg %p296
        $region42: #{tpu_custom_call.1} parent=11 // pred_check_branch
          %467 = sbr.rel (%p465) target = $region44
        $region43: #{tpu_custom_call.1} parent=11 // pred_region
          _
        $region44: #{tpu_custom_call.1} parent=11 // pred_fallthru
          _
        // Predicated region
        $region45: #{tpu_custom_call.1} parent=11 // pred_check
          %p468 = pneg %p317
        $region46: #{tpu_custom_call.1} parent=11 // pred_check_branch
          %470 = sbr.rel (%p468) target = $region48
        $region47: #{tpu_custom_call.1} parent=11 // pred_region
          _
        $region48: #{tpu_custom_call.1} parent=11 // pred_fallthru
          _
        // Predicated region
        $region49: #{tpu_custom_call.1} parent=11 // pred_check
          %p471 = pneg %p338
        $region50: #{tpu_custom_call.1} parent=11 // pred_check_branch
          %473 = sbr.rel (%p471) target = $region52
        $region51: #{tpu_custom_call.1} parent=11 // pred_region
          _
        $region52: #{tpu_custom_call.1} parent=11 // pred_fallthru
          _
      $region12: #{tpu_custom_call.1} parent=5 // pred_fallthru
        _
      %p474 = scmp.lt.s32.totalorder %s29, 2
      // Predicated region
      $region53: #{tpu_custom_call.1} parent=5 // pred_check
        %p475 = pneg %p474
      $region54: #{tpu_custom_call.1} parent=5 // pred_check_branch
        %477 = sbr.rel (%p475) target = $region56
      $region55: #{tpu_custom_call.1} parent=5 // pred_region
        // Predicated region
        $region57: #{tpu_custom_call.1} parent=55 // pred_check
          %p478 = pneg %p61
        $region58: #{tpu_custom_call.1} parent=55 // pred_check_branch
          %480 = sbr.rel (%p478) target = $region60
        $region59: #{tpu_custom_call.1} parent=55 // pred_region
          %s481 = sand.u32 %s51, 1
          %s482 = scalar_lea.sflag [#allocation6], %s481
          %s483 = sand.u32 %s51, 1
          %s484 = smul.addr %s483, 16
          %s485 = scalar_lea.vmem [#allocation5], %s484
          %487 = vsyncadd %s482, 0
          %s488 = smul.addr %s36, 2
          %s489 = smul.addr %s488, 8
          %s490 = scalar_lea.hbm %s0, %s489
          %s491 = sshll.u32 %s490, 4
          %s492 = int_to_ptr.hbm [resolvable:$true] %s491
          %s493 = sshll.u32 %s485, 4
          %s494 = int_to_ptr.vmem [resolvable:$true] %s493
          %499 = dma.hbm_to_vmem [thread:$0]  %s492, 256, %s494, %s482, 128, 128, 8
        $region60: #{tpu_custom_call.1} parent=55 // pred_fallthru
          _
        // Predicated region
        $region61: #{tpu_custom_call.1} parent=55 // pred_check
          %p500 = pneg %p87
        $region62: #{tpu_custom_call.1} parent=55 // pred_check_branch
          %502 = sbr.rel (%p500) target = $region64
        $region63: #{tpu_custom_call.1} parent=55 // pred_region
          %s503 = sand.u32 %s29, 1
          %s504 = scalar_lea.sflag [#allocation9], %s503
          %s505 = sand.u32 %s77, 1
          %s506 = smul.addr %s505, 16
          %s507 = scalar_lea.vmem [#allocation8], %s506
          %509 = vsyncadd %s504, 0
          %s510 = smul.addr %s36, 2
          %s511 = smul.addr %s510, 8
          %s512 = scalar_lea.hbm %s1, %s511
          %s513 = sshll.u32 %s512, 4
          %s514 = int_to_ptr.hbm [resolvable:$true] %s513
          %s515 = sshll.u32 %s507, 4
          %s516 = int_to_ptr.vmem [resolvable:$true] %s515
          %521 = dma.hbm_to_vmem [thread:$0]  %s514, 256, %s516, %s504, 128, 128, 8
        $region64: #{tpu_custom_call.1} parent=55 // pred_fallthru
          _
      $region56: #{tpu_custom_call.1} parent=5 // pred_fallthru
        _
      %p522 = scmp.le.s32.totalorder 1, %s29
      %p523 = scmp.lt.s32.totalorder %s29, 3
      %p524 = pnand %p522, %p523
      %p525 = pneg %p524
      // Predicated region
      $region65: #{tpu_custom_call.1} parent=5 // pred_check
        _
      $region66: #{tpu_custom_call.1} parent=5 // pred_check_branch
        %527 = sbr.rel (%p524) target = $region68
      $region67: #{tpu_custom_call.1} parent=5 // pred_region
        %s528 = ssub.s32 %s29, 1
        %s529 = sand.u32 %s54, 1
        %s530 = scalar_lea.sflag [#allocation6], %s529
        %s531 = sand.u32 %s54, 1
        %s532 = smul.addr %s531, 16
        %s533 = scalar_lea.vmem [#allocation5], %s532
        // Predicated region
        $region69: #{tpu_custom_call.1} parent=67 // pred_check
          %p534 = pneg %p67
        $region70: #{tpu_custom_call.1} parent=67 // pred_check_branch
          %536 = sbr.rel (%p534) target = $region72
        $region71: #{tpu_custom_call.1} parent=67 // pred_region
          %538 = dma.done %s530, 256
        $region72: #{tpu_custom_call.1} parent=67 // pred_fallthru
          _
        %s539 = sand.u32 %s34, 1
        %s540 = scalar_lea.sflag [#allocation9], %s539
        %s541 = sand.u32 %s80, 1
        %s542 = smul.addr %s541, 16
        %s543 = scalar_lea.vmem [#allocation8], %s542
        // Predicated region
        $region73: #{tpu_custom_call.1} parent=67 // pred_check
          %p544 = pneg %p93
        $region74: #{tpu_custom_call.1} parent=67 // pred_check_branch
          %546 = sbr.rel (%p544) target = $region76
        $region75: #{tpu_custom_call.1} parent=67 // pred_region
          %548 = dma.done %s540, 256
        $region76: #{tpu_custom_call.1} parent=67 // pred_fallthru
          _
        // Predicated region
        $region77: #{tpu_custom_call.1} parent=67 // pred_check
          %p549 = pneg %p119
        $region78: #{tpu_custom_call.1} parent=67 // pred_check_branch
          %551 = sbr.rel (%p549) target = $region80
        $region79: #{tpu_custom_call.1} parent=67 // pred_region
          %553 = dma.done [#allocation9], 512
        $region80: #{tpu_custom_call.1} parent=67 // pred_fallthru
          _
        // Predicated region
        $region81: #{tpu_custom_call.1} parent=67 // pred_check
          %p554 = pneg %p171
        $region82: #{tpu_custom_call.1} parent=67 // pred_check_branch
          %556 = sbr.rel (%p554) target = $region84
        $region83: #{tpu_custom_call.1} parent=67 // pred_region
          %558 = dma.done [#allocation12], 512
        $region84: #{tpu_custom_call.1} parent=67 // pred_fallthru
          _
        // Predicated region
        $region85: #{tpu_custom_call.1} parent=67 // pred_check
          %p559 = pneg %p223
        $region86: #{tpu_custom_call.1} parent=67 // pred_check_branch
          %561 = sbr.rel (%p559) target = $region88
        $region87: #{tpu_custom_call.1} parent=67 // pred_region
          %563 = dma.done [#allocation12], 512
        $region88: #{tpu_custom_call.1} parent=67 // pred_fallthru
          _
        // Predicated region
        $region89: #{tpu_custom_call.1} parent=67 // pred_check
          %p564 = pneg %p275
        $region90: #{tpu_custom_call.1} parent=67 // pred_check_branch
          %566 = sbr.rel (%p564) target = $region92
        $region91: #{tpu_custom_call.1} parent=67 // pred_region
          %568 = dma.done [#allocation15], 512
        $region92: #{tpu_custom_call.1} parent=67 // pred_fallthru
          _
        %s569 = sand.u32 %s54, 1
        %s570 = scalar_lea.sflag [#allocation6], %s569
        %s571 = sand.u32 %s54, 1
        %s572 = smul.addr %s571, 16
        %s573 = scalar_lea.vmem [#allocation5], %s572
        %p574 = pneg %p67
        %p575 = pneg %p64
        %s576 = sand.u32 %s34, 1
        %s577 = scalar_lea.sflag [#allocation9], %s576
        %s578 = sand.u32 %s80, 1
        %s579 = smul.addr %s578, 16
        %s580 = scalar_lea.vmem [#allocation8], %s579
        %p581 = pneg %p93
        %p582 = pneg %p90
        %p583 = pneg %p119
        %p584 = pneg %p116
        %p585 = scmp.lt.s32.totalorder %s39, 0
        %s586 = scalar_select %p585, %s39, 0
        %s587 = scalar_lea.vmem %s3, %s586
        %p588 = pneg %p145
        %p589 = pneg %p142
        %p590 = pneg %p171
        %p591 = pneg %p168
        %p592 = scmp.lt.s32.totalorder %s39, 0
        %s593 = scalar_select %p592, %s39, 0
        %s594 = scalar_lea.vmem %s5, %s593
        %p595 = pneg %p197
        %p596 = pneg %p194
        %p597 = pneg %p223
        %p598 = pneg %p220
        %p599 = scmp.lt.s32.totalorder %s39, 0
        %s600 = scalar_select %p599, %s39, 0
        %s601 = scalar_lea.vmem %s7, %s600
        %p602 = pneg %p249
        %p603 = pneg %p246
        %p604 = pneg %p275
        %p605 = pneg %p272
        %p606 = pneg %p296
        %p607 = pneg %p293
        %p608 = pneg %p317
        %p609 = pneg %p314
        %p610 = pneg %p338
        %p611 = pneg %p335
        %p612 = pneg %p364
        %p613 = pneg %p361
        %s614 = sand.u32 %s351, 1
        %s615 = scalar_lea.sflag [#allocation7], %s614
        %s616 = sand.u32 %s351, 1
        %s617 = smul.addr %s616, 16
        %s618 = scalar_lea.vmem [#allocation16], %s617
        %p619 = scmp.lt.s32.totalorder %s39, 0
        %s620 = scalar_select %p619, %s39, 0
        %s621 = scalar_lea.vmem %s3, %s620
        %p622 = scmp.lt.s32.totalorder %s39, 0
        %s623 = scalar_select %p622, %s39, 0
        %s624 = scalar_lea.vmem %s5, %s623
        %p625 = scmp.lt.s32.totalorder %s39, 0
        %s626 = scalar_select %p625, %s39, 0
        %s627 = scalar_lea.vmem %s7, %s626
        %p629 = scmp.eq.s32.totalorder %s39, 0
        // Predicated region
        $region93: #{tpu_custom_call.1} parent=67 // pred_check
          %p630 = pneg %p629
        $region94: #{tpu_custom_call.1} parent=67 // pred_check_branch
          %632 = sbr.rel (%p630) target = $region96
        $region95: #{tpu_custom_call.1} parent=67 // pred_region
          %vm633 = vcmask 523264
          %634 = vst.msk [vmem:[#allocation2] sm:$0xff] %vm633, 0.0
          %635 = vst.msk [vmem:[#allocation2 + $0x8] sm:$0xff] %vm633, 0.0
          %v636 = vld [vmem:[%s533] sm:$0xff]
          %v637 = vld [vmem:[%s533 + $0x8] sm:$0xff]
          %v638 = vpack.c.bf16 %v636, %v636
          %v639 = vpack.c.bf16 %v637, %v637
          %vm640 = vcmask 519168
          %641 = vst.msk [vmem:[#allocation4] sm:$0xf] %vm640, %v638
          %642 = vst.msk [vmem:[#allocation4 + $0x4] sm:$0xf] %vm640, %v639
          %v643 = vld [vmem:[%s543] sm:$0xff]
          %v644 = vld [vmem:[%s543 + $0x8] sm:$0xff]
          %v645 = vadd.f32 %v636, %v643
          %v646 = vadd.f32 %v637, %v644
          %v647 = vpack.c.bf16 %v645, %v645
          %v648 = vpack.c.bf16 %v646, %v646
          %649 = vst.msk [vmem:[#allocation3] sm:$0xf] %vm640, %v647
          %650 = vst.msk [vmem:[#allocation3 + $0x4] sm:$0xf] %vm640, %v648
        $region96: #{tpu_custom_call.1} parent=67 // pred_fallthru
          _
        %v651 = vld [vmem:[#allocation3] sm:$0xf]
        %v652 = vld [vmem:[#allocation3 + $0x4] sm:$0xf]
        %v653 = vld [vmem:[#allocation4] sm:$0xf]
        %v654 = vld [vmem:[#allocation4 + $0x4] sm:$0xf]
        %v655 = vld [vmem:[#allocation10] sm:$0xf]
        %v656 = vld [vmem:[#allocation10 + $0x4] sm:$0xf]
        %v657 = vld [vmem:[#allocation10 + $0x8] sm:$0xf]
        %v658 = vld [vmem:[#allocation10 + $0xc] sm:$0xf]
        %v659 = vld [vmem:[#allocation10 + $0x10] sm:$0xf]
        %v660 = vld [vmem:[#allocation10 + $0x14] sm:$0xf]
        %v661 = vld [vmem:[#allocation10 + $0x18] sm:$0xf]
        %v662 = vld [vmem:[#allocation10 + $0x1c] sm:$0xf]
        %v663 = vld [vmem:[%s621] sm:$0x1]
        %v665 = vperm.slane %v663, 0
        %v669 = vunpack.c.l.b16 %v651
        %v670 = vunpack.c.l.b16 %v652
        %v671 = vpack.c.b16 %v670, %v669
        %v680 = vunpack.c.l.b16 %v655
        %v681 = vunpack.c.l.b16 %v656
        %v682 = vunpack.c.l.b16 %v657
        %v683 = vunpack.c.l.b16 %v658
        %v684 = vunpack.c.l.b16 %v659
        %v685 = vunpack.c.l.b16 %v660
        %v686 = vunpack.c.l.b16 %v661
        %v687 = vunpack.c.l.b16 %v662
        %v688 = vpack.c.b16 %v681, %v680
        %v689 = vpack.c.b16 %v683, %v682
        %v690 = vpack.c.b16 %v685, %v684
        %v691 = vpack.c.b16 %v687, %v686
        %vm696 = vcmask 523264
        %v698 = vsel %vm696, %v671, 0
        %700 = vmatpush.bf16.msra.mxu0 0
        %701 = vmatpush.bf16.msra.mxu0 0
        %702 = vmatpush.bf16.msra.mxu0 0
        %703 = vmatpush.bf16.msra.mxu0 0
        %704 = vmatpush.bf16.msra.mxu0 %v691
        %705 = vmatpush.bf16.msra.mxu0 %v690
        %706 = vmatpush.bf16.msra.mxu0 %v689
        %707 = vmatpush.bf16.msra.mxu0 %v688
        %708 = vmatmul.bf16.gmra.mxu0 %v698
        %v709 = vpop.f32.mrf.mxu0
        %v710 = vadd.f32 %v665, %v709
        %v711 = vpop.f32.mrf.mxu0
        %v712 = vadd.f32 %v665, %v711
        %713 = vdwg.mxu0
        %v714 = vld [vmem:[#allocation11] sm:$0xf]
        %v715 = vld [vmem:[#allocation11 + $0x4] sm:$0xf]
        %v716 = vld [vmem:[#allocation11 + $0x8] sm:$0xf]
        %v717 = vld [vmem:[#allocation11 + $0xc] sm:$0xf]
        %v718 = vld [vmem:[#allocation11 + $0x10] sm:$0xf]
        %v719 = vld [vmem:[#allocation11 + $0x14] sm:$0xf]
        %v720 = vld [vmem:[#allocation11 + $0x18] sm:$0xf]
        %v721 = vld [vmem:[#allocation11 + $0x1c] sm:$0xf]
        %v722 = vld [vmem:[%s624] sm:$0x1]
        %v724 = vperm.slane %v722, 0
        %v734 = vunpack.c.l.b16 %v714
        %v735 = vunpack.c.l.b16 %v715
        %v736 = vunpack.c.l.b16 %v716
        %v737 = vunpack.c.l.b16 %v717
        %v738 = vunpack.c.l.b16 %v718
        %v739 = vunpack.c.l.b16 %v719
        %v740 = vunpack.c.l.b16 %v720
        %v741 = vunpack.c.l.b16 %v721
        %v742 = vpack.c.b16 %v735, %v734
        %v743 = vpack.c.b16 %v737, %v736
        %v744 = vpack.c.b16 %v739, %v738
        %v745 = vpack.c.b16 %v741, %v740
        %750 = vmatpush.bf16.msra.mxu0 0
        %751 = vmatpush.bf16.msra.mxu0 0
        %752 = vmatpush.bf16.msra.mxu0 0
        %753 = vmatpush.bf16.msra.mxu0 0
        %754 = vmatpush.bf16.msra.mxu0 %v745
        %755 = vmatpush.bf16.msra.mxu0 %v744
        %756 = vmatpush.bf16.msra.mxu0 %v743
        %757 = vmatpush.bf16.msra.mxu0 %v742
        %758 = vmatmul.bf16.gmra.mxu0 %v698
        %v759 = vpop.f32.mrf.mxu0
        %v760 = vadd.f32 %v724, %v759
        %v761 = vpop.f32.mrf.mxu0
        %v762 = vadd.f32 %v724, %v761
        %763 = vdwg.mxu0
        %v764 = vld [vmem:[#allocation13] sm:$0xf]
        %v765 = vld [vmem:[#allocation13 + $0x4] sm:$0xf]
        %v766 = vld [vmem:[#allocation13 + $0x8] sm:$0xf]
        %v767 = vld [vmem:[#allocation13 + $0xc] sm:$0xf]
        %v768 = vld [vmem:[#allocation13 + $0x10] sm:$0xf]
        %v769 = vld [vmem:[#allocation13 + $0x14] sm:$0xf]
        %v770 = vld [vmem:[#allocation13 + $0x18] sm:$0xf]
        %v771 = vld [vmem:[#allocation13 + $0x1c] sm:$0xf]
        %v772 = vld [vmem:[%s627] sm:$0x1]
        %v774 = vperm.slane %v772, 0
        %v778 = vunpack.c.l.b16 %v653
        %v779 = vunpack.c.l.b16 %v654
        %v780 = vpack.c.b16 %v779, %v778
        %v789 = vunpack.c.l.b16 %v764
        %v790 = vunpack.c.l.b16 %v765
        %v791 = vunpack.c.l.b16 %v766
        %v792 = vunpack.c.l.b16 %v767
        %v793 = vunpack.c.l.b16 %v768
        %v794 = vunpack.c.l.b16 %v769
        %v795 = vunpack.c.l.b16 %v770
        %v796 = vunpack.c.l.b16 %v771
        %v797 = vpack.c.b16 %v790, %v789
        %v798 = vpack.c.b16 %v792, %v791
        %v799 = vpack.c.b16 %v794, %v793
        %v800 = vpack.c.b16 %v796, %v795
        %v806 = vsel %vm696, %v780, 0
        %808 = vmatpush.bf16.msra.mxu0 0
        %809 = vmatpush.bf16.msra.mxu0 0
        %810 = vmatpush.bf16.msra.mxu0 0
        %811 = vmatpush.bf16.msra.mxu0 0
        %812 = vmatpush.bf16.msra.mxu0 %v800
        %813 = vmatpush.bf16.msra.mxu0 %v799
        %814 = vmatpush.bf16.msra.mxu0 %v798
        %815 = vmatpush.bf16.msra.mxu0 %v797
        %816 = vmatmul.bf16.gmra.mxu0 %v806
        %v817 = vpop.f32.mrf.mxu0
        %v818 = vadd.f32 %v774, %v817
        %v819 = vpop.f32.mrf.mxu0
        %v820 = vadd.f32 %v774, %v819
        %821 = vdwg.mxu0
        %v822 = vpack.c.bf16 %v712, %v710
        %v823 = vpack.c.bf16 %v762, %v760
        %v824 = vpack.c.bf16 %v820, %v818
        %vm825 = vcmask 130048
        %v827 = vsel %vm825, %v822, 0
        %v830 = vsel %vm825, %v823, 0
        %832 = vmatpush.bf16.xpose.msra.mxu0 0
        %833 = vmatpush.bf16.xpose.msra.mxu0 0
        %834 = vmatpush.bf16.xpose.msra.mxu0 0
        %835 = vmatpush.bf16.xpose.msra.mxu0 0
        %836 = vmatpush.bf16.xpose.msra.mxu0 0
        %837 = vmatpush.bf16.xpose.msra.mxu0 0
        %838 = vmatpush.bf16.xpose.msra.mxu0 0
        %839 = vmatpush.bf16.xpose.msra.mxu0 %v830
        %840 = vmatmul.bf16.gmra.mxu0 %v827
        %v841 = vpop.f32.mrf.mxu0
        %v842 = vadd.f32 0.0, %v841
        %v843 = vpop.f32.mrf.mxu0
        %v844 = vadd.f32 0.0, %v843
        %845 = vdwg.mxu0
        %v846 = vsel %vm825, %v842, -inf
        %847 = vmax.xlane.f32.xlu0 %v846
        %v848 = vpop.xlane.xlu0 %847
        %v849 = vsel %vm825, %v844, -inf
        %850 = vmax.xlane.f32.xlu0 %v849
        %v851 = vpop.xlane.xlu0 %850
        %v852 = vsub.f32 %v842, %v848
        %v853 = vsub.f32 %v844, %v851
        %v854 = vmul.f32 %v852, 1.442695
        %v855 = vpow.pop %v854
        %v856 = vmul.f32 %v853, 1.442695
        %v857 = vpow.pop %v856
        %v858 = vsel %vm825, %v855, 0.0
        %859 = vadd.xlane.f32.xlu0 %v858
        %v860 = vpop.xlane.xlu0 %859
        %v861 = vsel %vm825, %v857, 0.0
        %862 = vadd.xlane.f32.xlu0 %v861
        %v863 = vpop.xlane.xlu0 %862
        %v864 = vpack.c.bf16 %v857, %v855
        %v866 = vsel %vm825, %v864, 0
        %868 = vmatpush.bf16.msra.mxu0 0
        %869 = vmatpush.bf16.msra.mxu0 0
        %870 = vmatpush.bf16.msra.mxu0 0
        %871 = vmatpush.bf16.msra.mxu0 0
        %872 = vmatpush.bf16.msra.mxu0 0
        %873 = vmatpush.bf16.msra.mxu0 0
        %874 = vmatpush.bf16.msra.mxu0 0
        %875 = vmatpush.bf16.msra.mxu0 %v824
        %876 = vmatmul.bf16.gmra.mxu0 %v866
        %v877 = vpop.f32.mrf.mxu0
        %v878 = vadd.f32 0.0, %v877
        %v879 = vpop.f32.mrf.mxu0
        %v880 = vadd.f32 0.0, %v879
        %881 = vdwg.mxu0
        %v882 = vrcp.pop %v860
        %v883 = vrcp.pop %v863
        %v884 = vmul.f32 %v878, %v882
        %v885 = vmul.f32 %v880, %v883
        %v886 = vpack.c.bf16 %v884, %v884
        %v887 = vpack.c.bf16 %v885, %v885
        %889 = vrot.lane.b32.xlu0 %v822, 112
        %v890 = vpop.permute.xlu0 %889
        %892 = vrot.lane.b32.xlu0 %v823, 112
        %v893 = vpop.permute.xlu0 %892
        %v895 = vsel %vm825, %v890, 0
        %v898 = vsel %vm825, %v893, 0
        %900 = vmatpush.bf16.xpose.msra.mxu0 0
        %901 = vmatpush.bf16.xpose.msra.mxu0 0
        %902 = vmatpush.bf16.xpose.msra.mxu0 0
        %903 = vmatpush.bf16.xpose.msra.mxu0 0
        %904 = vmatpush.bf16.xpose.msra.mxu0 0
        %905 = vmatpush.bf16.xpose.msra.mxu0 0
        %906 = vmatpush.bf16.xpose.msra.mxu0 0
        %907 = vmatpush.bf16.xpose.msra.mxu0 %v898
        %908 = vmatmul.bf16.gmra.mxu0 %v895
        %v909 = vpop.f32.mrf.mxu0
        %v910 = vadd.f32 0.0, %v909
        %v911 = vpop.f32.mrf.mxu0
        %v912 = vadd.f32 0.0, %v911
        %913 = vdwg.mxu0
        %v914 = vsel %vm825, %v910, -inf
        %915 = vmax.xlane.f32.xlu0 %v914
        %v916 = vpop.xlane.xlu0 %915
        %v917 = vsel %vm825, %v912, -inf
        %918 = vmax.xlane.f32.xlu0 %v917
        %v919 = vpop.xlane.xlu0 %918
        %v920 = vsub.f32 %v910, %v916
        %v921 = vsub.f32 %v912, %v919
        %v922 = vmul.f32 %v920, 1.442695
        %v923 = vpow.pop %v922
        %v924 = vmul.f32 %v921, 1.442695
        %v925 = vpow.pop %v924
        %v926 = vsel %vm825, %v923, 0.0
        %927 = vadd.xlane.f32.xlu0 %v926
        %v928 = vpop.xlane.xlu0 %927
        %v929 = vsel %vm825, %v925, 0.0
        %930 = vadd.xlane.f32.xlu0 %v929
        %v931 = vpop.xlane.xlu0 %930
        %v932 = vpack.c.bf16 %v925, %v923
        %934 = vrot.lane.b32.xlu0 %v824, 112
        %v935 = vpop.permute.xlu0 %934
        %v938 = vsel %vm825, %v932, 0
        %940 = vmatpush.bf16.msra.mxu0 0
        %941 = vmatpush.bf16.msra.mxu0 0
        %942 = vmatpush.bf16.msra.mxu0 0
        %943 = vmatpush.bf16.msra.mxu0 0
        %944 = vmatpush.bf16.msra.mxu0 0
        %945 = vmatpush.bf16.msra.mxu0 0
        %946 = vmatpush.bf16.msra.mxu0 0
        %947 = vmatpush.bf16.msra.mxu0 %v935
        %948 = vmatmul.bf16.gmra.mxu0 %v938
        %v949 = vpop.f32.mrf.mxu0
        %v950 = vadd.f32 0.0, %v949
        %v951 = vpop.f32.mrf.mxu0
        %v952 = vadd.f32 0.0, %v951
        %953 = vdwg.mxu0
        %v954 = vrcp.pop %v928
        %v955 = vrcp.pop %v931
        %v956 = vmul.f32 %v950, %v954
        %v957 = vmul.f32 %v952, %v955
        %v958 = vpack.c.bf16 %v956, %v956
        %v959 = vpack.c.bf16 %v957, %v957
        %960 = vrot.lane.b32.xlu0 %v822, 96
        %v961 = vpop.permute.xlu0 %960
        %962 = vrot.lane.b32.xlu0 %v823, 96
        %v963 = vpop.permute.xlu0 %962
        %v965 = vsel %vm825, %v961, 0
        %v968 = vsel %vm825, %v963, 0
        %970 = vmatpush.bf16.xpose.msra.mxu0 0
        %971 = vmatpush.bf16.xpose.msra.mxu0 0
        %972 = vmatpush.bf16.xpose.msra.mxu0 0
        %973 = vmatpush.bf16.xpose.msra.mxu0 0
        %974 = vmatpush.bf16.xpose.msra.mxu0 0
        %975 = vmatpush.bf16.xpose.msra.mxu0 0
        %976 = vmatpush.bf16.xpose.msra.mxu0 0
        %977 = vmatpush.bf16.xpose.msra.mxu0 %v968
        %978 = vmatmul.bf16.gmra.mxu0 %v965
        %v979 = vpop.f32.mrf.mxu0
        %v980 = vadd.f32 0.0, %v979
        %v981 = vpop.f32.mrf.mxu0
        %v982 = vadd.f32 0.0, %v981
        %983 = vdwg.mxu0
        %v984 = vsel %vm825, %v980, -inf
        %985 = vmax.xlane.f32.xlu0 %v984
        %v986 = vpop.xlane.xlu0 %985
        %v987 = vsel %vm825, %v982, -inf
        %988 = vmax.xlane.f32.xlu0 %v987
        %v989 = vpop.xlane.xlu0 %988
        %v990 = vsub.f32 %v980, %v986
        %v991 = vsub.f32 %v982, %v989
        %v992 = vmul.f32 %v990, 1.442695
        %v993 = vpow.pop %v992
        %v994 = vmul.f32 %v991, 1.442695
        %v995 = vpow.pop %v994
        %v996 = vsel %vm825, %v993, 0.0
        %997 = vadd.xlane.f32.xlu0 %v996
        %v998 = vpop.xlane.xlu0 %997
        %v999 = vsel %vm825, %v995, 0.0
        %1000 = vadd.xlane.f32.xlu0 %v999
        %v1001 = vpop.xlane.xlu0 %1000
        %v1002 = vpack.c.bf16 %v995, %v993
        %1003 = vrot.lane.b32.xlu0 %v824, 96
        %v1004 = vpop.permute.xlu0 %1003
        %v1007 = vsel %vm825, %v1002, 0
        %1009 = vmatpush.bf16.msra.mxu0 0
        %1010 = vmatpush.bf16.msra.mxu0 0
        %1011 = vmatpush.bf16.msra.mxu0 0
        %1012 = vmatpush.bf16.msra.mxu0 0
        %1013 = vmatpush.bf16.msra.mxu0 0
        %1014 = vmatpush.bf16.msra.mxu0 0
        %1015 = vmatpush.bf16.msra.mxu0 0
        %1016 = vmatpush.bf16.msra.mxu0 %v1004
        %1017 = vmatmul.bf16.gmra.mxu0 %v1007
        %v1018 = vpop.f32.mrf.mxu0
        %v1019 = vadd.f32 0.0, %v1018
        %v1020 = vpop.f32.mrf.mxu0
        %v1021 = vadd.f32 0.0, %v1020
        %1022 = vdwg.mxu0
        %v1023 = vrcp.pop %v998
        %v1024 = vrcp.pop %v1001
        %v1025 = vmul.f32 %v1019, %v1023
        %v1026 = vmul.f32 %v1021, %v1024
        %v1027 = vpack.c.bf16 %v1025, %v1025
        %v1028 = vpack.c.bf16 %v1026, %v1026
        %1029 = vrot.lane.b32.xlu0 %v822, 80
        %v1030 = vpop.permute.xlu0 %1029
        %1031 = vrot.lane.b32.xlu0 %v823, 80
        %v1032 = vpop.permute.xlu0 %1031
        %v1034 = vsel %vm825, %v1030, 0
        %v1037 = vsel %vm825, %v1032, 0
        %1039 = vmatpush.bf16.xpose.msra.mxu0 0
        %1040 = vmatpush.bf16.xpose.msra.mxu0 0
        %1041 = vmatpush.bf16.xpose.msra.mxu0 0
        %1042 = vmatpush.bf16.xpose.msra.mxu0 0
        %1043 = vmatpush.bf16.xpose.msra.mxu0 0
        %1044 = vmatpush.bf16.xpose.msra.mxu0 0
        %1045 = vmatpush.bf16.xpose.msra.mxu0 0
        %1046 = vmatpush.bf16.xpose.msra.mxu0 %v1037
        %1047 = vmatmul.bf16.gmra.mxu0 %v1034
        %v1048 = vpop.f32.mrf.mxu0
        %v1049 = vadd.f32 0.0, %v1048
        %v1050 = vpop.f32.mrf.mxu0
        %v1051 = vadd.f32 0.0, %v1050
        %1052 = vdwg.mxu0
        %v1053 = vsel %vm825, %v1049, -inf
        %1054 = vmax.xlane.f32.xlu0 %v1053
        %v1055 = vpop.xlane.xlu0 %1054
        %v1056 = vsel %vm825, %v1051, -inf
        %1057 = vmax.xlane.f32.xlu0 %v1056
        %v1058 = vpop.xlane.xlu0 %1057
        %v1059 = vsub.f32 %v1049, %v1055
        %v1060 = vsub.f32 %v1051, %v1058
        %v1061 = vmul.f32 %v1059, 1.442695
        %v1062 = vpow.pop %v1061
        %v1063 = vmul.f32 %v1060, 1.442695
        %v1064 = vpow.pop %v1063
        %v1065 = vsel %vm825, %v1062, 0.0
        %1066 = vadd.xlane.f32.xlu0 %v1065
        %v1067 = vpop.xlane.xlu0 %1066
        %v1068 = vsel %vm825, %v1064, 0.0
        %1069 = vadd.xlane.f32.xlu0 %v1068
        %v1070 = vpop.xlane.xlu0 %1069
        %v1071 = vpack.c.bf16 %v1064, %v1062
        %1072 = vrot.lane.b32.xlu0 %v824, 80
        %v1073 = vpop.permute.xlu0 %1072
        %v1076 = vsel %vm825, %v1071, 0
        %1078 = vmatpush.bf16.msra.mxu0 0
        %1079 = vmatpush.bf16.msra.mxu0 0
        %1080 = vmatpush.bf16.msra.mxu0 0
        %1081 = vmatpush.bf16.msra.mxu0 0
        %1082 = vmatpush.bf16.msra.mxu0 0
        %1083 = vmatpush.bf16.msra.mxu0 0
        %1084 = vmatpush.bf16.msra.mxu0 0
        %1085 = vmatpush.bf16.msra.mxu0 %v1073
        %1086 = vmatmul.bf16.gmra.mxu0 %v1076
        %v1087 = vpop.f32.mrf.mxu0
        %v1088 = vadd.f32 0.0, %v1087
        %v1089 = vpop.f32.mrf.mxu0
        %v1090 = vadd.f32 0.0, %v1089
        %1091 = vdwg.mxu0
        %v1092 = vrcp.pop %v1067
        %v1093 = vrcp.pop %v1070
        %v1094 = vmul.f32 %v1088, %v1092
        %v1095 = vmul.f32 %v1090, %v1093
        %v1096 = vpack.c.bf16 %v1094, %v1094
        %v1097 = vpack.c.bf16 %v1095, %v1095
        %v1100 = vunpack.c.l.b16 %v886
        %v1101 = vunpack.c.l.b16 %v887
        %v1102 = vpack.c.b16 %v1101, %v1100
        %v1105 = vunpack.c.l.b16 %v958
        %v1106 = vunpack.c.l.b16 %v959
        %v1107 = vpack.c.b16 %v1106, %v1105
        %1108 = vrot.lane.b32.xlu0 %v1107, 16
        %v1109 = vpop.permute.xlu0 %1108
        %v1112 = vunpack.c.l.b16 %v1027
        %v1113 = vunpack.c.l.b16 %v1028
        %v1114 = vpack.c.b16 %v1113, %v1112
        %1115 = vrot.lane.b32.xlu0 %v1114, 32
        %v1116 = vpop.permute.xlu0 %1115
        %v1119 = vunpack.c.l.b16 %v1096
        %v1120 = vunpack.c.l.b16 %v1097
        %v1121 = vpack.c.b16 %v1120, %v1119
        %1122 = vrot.lane.b32.xlu0 %v1121, 48
        %v1123 = vpop.permute.xlu0 %1122
        %v1126 = vsel %vm825, %v1102, %v1109
        %vm1127 = vcmask 261120
        %v1129 = vsel %vm1127, %v1126, %v1116
        %vm1130 = vcmask 392192
        %v1132 = vsel %vm1130, %v1129, %v1123
        %v1133 = vld [vmem:[#allocation2] sm:$0xff]
        %v1134 = vld [vmem:[#allocation2 + $0x8] sm:$0xff]
        %v1135 = vld [vmem:[#allocation14] sm:$0xf]
        %v1136 = vld [vmem:[#allocation14 + $0x4] sm:$0xf]
        %v1137 = vld [vmem:[#allocation14 + $0x8] sm:$0xf]
        %v1138 = vld [vmem:[#allocation14 + $0xc] sm:$0xf]
        %v1139 = vld [vmem:[#allocation14 + $0x10] sm:$0xf]
        %v1140 = vld [vmem:[#allocation14 + $0x14] sm:$0xf]
        %v1141 = vld [vmem:[#allocation14 + $0x18] sm:$0xf]
        %v1142 = vld [vmem:[#allocation14 + $0x1c] sm:$0xf]
        %v1151 = vunpack.c.l.b16 %v1135
        %v1152 = vunpack.c.l.b16 %v1136
        %v1153 = vunpack.c.l.b16 %v1137
        %v1154 = vunpack.c.l.b16 %v1138
        %v1155 = vunpack.c.l.b16 %v1139
        %v1156 = vunpack.c.l.b16 %v1140
        %v1157 = vunpack.c.l.b16 %v1141
        %v1158 = vunpack.c.l.b16 %v1142
        %v1159 = vpack.c.b16 %v1152, %v1151
        %v1160 = vpack.c.b16 %v1154, %v1153
        %v1161 = vpack.c.b16 %v1156, %v1155
        %v1162 = vpack.c.b16 %v1158, %v1157
        %v1167 = vsel %vm696, %v1132, 0
        %1169 = vmatpush.bf16.msra.mxu0 0
        %1170 = vmatpush.bf16.msra.mxu0 0
        %1171 = vmatpush.bf16.msra.mxu0 0
        %1172 = vmatpush.bf16.msra.mxu0 0
        %1173 = vmatpush.bf16.msra.mxu0 %v1162
        %1174 = vmatpush.bf16.msra.mxu0 %v1161
        %1175 = vmatpush.bf16.msra.mxu0 %v1160
        %1176 = vmatpush.bf16.msra.mxu0 %v1159
        %1177 = vmatmul.bf16.gmra.mxu0 %v1167
        %v1178 = vpop.f32.mrf.mxu0
        %v1179 = vadd.f32 0.0, %v1178
        %v1180 = vpop.f32.mrf.mxu0
        %v1181 = vadd.f32 0.0, %v1180
        %1182 = vdwg.mxu0
        %v1183 = vadd.f32 %v1133, %v1179
        %v1184 = vadd.f32 %v1134, %v1181
        %1185 = vst.msk [vmem:[#allocation2] sm:$0xff] %vm696, %v1183
        %1186 = vst.msk [vmem:[#allocation2 + $0x8] sm:$0xff] %vm696, %v1184
        // Predicated region
        $region97: #{tpu_custom_call.1} parent=67 // pred_check
          %p1187 = pneg %p629
        $region98: #{tpu_custom_call.1} parent=67 // pred_check_branch
          %1189 = sbr.rel (%p1187) target = $region100
        $region99: #{tpu_custom_call.1} parent=67 // pred_region
          %v1190 = vld [vmem:[#allocation2] sm:$0xff]
          %v1191 = vld [vmem:[#allocation2 + $0x8] sm:$0xff]
          %v1192 = vld [vmem:[%s9] sm:$0x1]
          %v1194 = vperm.slane %v1192, 0
          %v1196 = vadd.f32 %v1190, %v1194
          %v1197 = vadd.f32 %v1191, %v1194
          %v1198 = vld [vmem:[%s533] sm:$0xff]
          %v1199 = vld [vmem:[%s533 + $0x8] sm:$0xff]
          %v1200 = vadd.f32 %v1198, %v1196
          %v1201 = vadd.f32 %v1199, %v1197
          %v1202 = vsel %vm696, %v1200, 0.0
          %1203 = vadd.xlane.f32.xlu0 %v1202
          %v1204 = vpop.xlane.xlu0 %1203
          %v1205 = vsel %vm696, %v1201, 0.0
          %1206 = vadd.xlane.f32.xlu0 %v1205
          %v1207 = vpop.xlane.xlu0 %1206
          %v1208 = vrcp.pop 64.0
          %v1209 = vmul.f32 64.0, %v1208
          %v1210 = vsub.f32 1.0, %v1209
          %v1211 = vmul.f32 %v1208, %v1210
          %v1212 = vadd.f32 %v1208, %v1211
          %vm1213 = vweird.f32 %v1208
          %v1214 = vsel %vm1213, %v1208, %v1212
          %v1215 = vmul.f32 %v1204, %v1214
          %v1216 = vmul.f32 %v1207, %v1214
          %v1217 = vsub.f32 %v1200, %v1215
          %v1218 = vsub.f32 %v1201, %v1216
          %v1219 = vmul.f32 %v1217, %v1217
          %v1220 = vmul.f32 %v1218, %v1218
          %v1221 = vsel %vm696, %v1219, 0.0
          %1222 = vadd.xlane.f32.xlu0 %v1221
          %v1223 = vpop.xlane.xlu0 %1222
          %v1224 = vsel %vm696, %v1220, 0.0
          %1225 = vadd.xlane.f32.xlu0 %v1224
          %v1226 = vpop.xlane.xlu0 %1225
          %v1227 = vmul.f32 %v1223, %v1214
          %v1228 = vmul.f32 %v1226, %v1214
          %v1229 = vadd.f32 %v1227, 1e-05
          %v1230 = vadd.f32 %v1228, 1e-05
          %v1231 = vrsqrt.pop %v1229
          %v1232 = vmul.f32 %v1231, %v1229
          %v1233 = vmul.f32 %v1232, %v1231
          %v1234 = vmul.f32 0.5, %v1233
          %v1235 = vsub.f32 1.5, %v1234
          %v1236 = vmul.f32 %v1231, %v1235
          %vm1237 = vweird.f32 %v1229
          %vm1238 = vweird.f32 %v1231
          %vm1239 = vmor %vm1237, %vm1238
          %v1240 = vsel %vm1239, %v1231, %v1236
          %v1241 = vrsqrt.pop %v1230
          %v1242 = vmul.f32 %v1241, %v1230
          %v1243 = vmul.f32 %v1242, %v1241
          %v1244 = vmul.f32 0.5, %v1243
          %v1245 = vsub.f32 1.5, %v1244
          %v1246 = vmul.f32 %v1241, %v1245
          %vm1247 = vweird.f32 %v1230
          %vm1248 = vweird.f32 %v1241
          %vm1249 = vmor %vm1247, %vm1248
          %v1250 = vsel %vm1249, %v1241, %v1246
          %v1251 = vmul.f32 %v1217, %v1240
          %v1252 = vmul.f32 %v1218, %v1250
          %v1253 = vld [vmem:[%s10] sm:$0x1]
          %v1255 = vperm.slane %v1253, 0
          %v1257 = vmul.f32 %v1251, %v1255
          %v1258 = vmul.f32 %v1252, %v1255
          %v1259 = vld [vmem:[%s11] sm:$0x1]
          %v1261 = vperm.slane %v1259, 0
          %v1263 = vadd.f32 %v1257, %v1261
          %v1264 = vadd.f32 %v1258, %v1261
          %1265 = vst.msk [vmem:[%s618] sm:$0xff] %vm696, %v1263
          %1266 = vst.msk [vmem:[%s618 + $0x8] sm:$0xff] %vm696, %v1264
        $region100: #{tpu_custom_call.1} parent=67 // pred_fallthru
          _
        %s1267 = sand.u32 %s351, 1
        %s1268 = scalar_lea.sflag [#allocation7], %s1267
        %s1269 = sand.u32 %s351, 1
        %s1270 = smul.addr %s1269, 16
        %s1271 = scalar_lea.vmem [#allocation16], %s1270
        // Predicated region
        $region101: #{tpu_custom_call.1} parent=67 // pred_check
          %p1272 = pneg %p361
        $region102: #{tpu_custom_call.1} parent=67 // pred_check_branch
          %1274 = sbr.rel (%p1272) target = $region104
        $region103: #{tpu_custom_call.1} parent=67 // pred_region
          %1276 = vsyncadd %s1268, 0
          %s1277 = smul.addr %s38, 2
          %s1278 = smul.addr %s1277, 8
          %s1279 = scalar_lea.hbm %s12, %s1278
          %s1280 = sshll.u32 %s1271, 4
          %s1281 = int_to_ptr.vmem [resolvable:$true] %s1280
          %s1282 = sshll.u32 %s1279, 4
          %s1283 = int_to_ptr.hbm [resolvable:$true] %s1282
          %1288 = dma.vmem_to_hbm [thread:$0]  %s1281, 256, %s1283, %s1268, 128, 128, 8
        $region104: #{tpu_custom_call.1} parent=67 // pred_fallthru
          _
      $region68: #{tpu_custom_call.1} parent=5 // pred_fallthru
        _
      %p1289 = scmp.le.s32.totalorder 2, %s29
      // Predicated region
      $region105: #{tpu_custom_call.1} parent=5 // pred_check
        %p1290 = pneg %p1289
      $region106: #{tpu_custom_call.1} parent=5 // pred_check_branch
        %1292 = sbr.rel (%p1290) target = $region108
      $region107: #{tpu_custom_call.1} parent=5 // pred_region
        %s1293 = ssub.s32 %s29, 2
        // Predicated region
        $region109: #{tpu_custom_call.1} parent=107 // pred_check
          %p1294 = pneg %p367
        $region110: #{tpu_custom_call.1} parent=107 // pred_check_branch
          %1296 = sbr.rel (%p1294) target = $region112
        $region111: #{tpu_custom_call.1} parent=107 // pred_region
          %s1297 = sand.u32 %s352, 1
          %s1298 = scalar_lea.sflag [#allocation7], %s1297
          %s1299 = sand.u32 %s352, 1
          %s1300 = smul.addr %s1299, 16
          %s1301 = scalar_lea.vmem [#allocation16], %s1300
          %1303 = dma.done %s1298, 256
        $region112: #{tpu_custom_call.1} parent=107 // pred_fallthru
          _
      $region108: #{tpu_custom_call.1} parent=5 // pred_fallthru
        _
    $region6: #{tpu_custom_call.1} parent=1 // loop_footer
      %s33 = sadd.s32 1, %s29
    $region7: #{tpu_custom_call.1} parent=1 // loop_footer_branch
      %28 = sbr.rel target = $region3
    $region8: #{tpu_custom_call.1} parent=1 // loop_exit
      _
    %1304 = vsyncpa [#allocation6], 1
    %s1305 = scalar_lea.sflag [#allocation6], 1
    %1306 = vsyncpa %s1305, 1
    %1307 = vsyncpa [#allocation9], 1
    %s1308 = scalar_lea.sflag [#allocation9], 1
    %1309 = vsyncpa %s1308, 1
    %1310 = vsyncpa [#allocation12], 1
    %1311 = vsyncpa [#allocation15], 1
    %1312 = vsyncpa [#allocation7], 1
    %s1313 = scalar_lea.sflag [#allocation7], 1
    %1314 = vsyncpa %s1313, 1

</llo_original>
